<compile_context>
chip_gen: v6e
topology: v6e:2x2x1
jax: 0.10.0
libtpu: 0.0.40
codegen_flags: <defaults>
</compile_context>

<pallas_src>
import jax
import jax.numpy as jnp
from jax.experimental import pallas as pl
from jax.experimental.pallas import tpu as pltpu

_TM = 1024         # max lane tile over the flattened N*H*W dimension
_BN_EPS = 1e-5


def _round_up(x, m):
    return ((x + m - 1) // m) * m


# ----------------------------------------------------------------------------
# Pallas kernels: (Cout, K) @ (K, TM), f32 accumulate, fused epilogue.
# ----------------------------------------------------------------------------
def _matmul_bias_kernel(w_ref, x_ref, b_ref, o_ref):
    acc = jnp.dot(w_ref[...], x_ref[...], preferred_element_type=jnp.float32)
    o_ref[...] = acc + b_ref[...]


def _matmul_shift_relu_kernel(w_ref, x_ref, s_ref, o_ref):
    acc = jnp.dot(w_ref[...], x_ref[...], preferred_element_type=jnp.float32)
    o_ref[...] = jnp.maximum(acc + s_ref[...], 0.0)


def _matmul_epilogue(w, x, vec, relu):
    """epilogue(w @ x + vec[:, None]) with lanes = M (padded to 128-multiples).

    w: (Nout, K) f32 (BN scale already folded in for conv layers),
    x: (K, M) f32,  vec: (Nout,) f32 bias/shift.
    """
    nout, k = w.shape
    m = x.shape[1]

    # Pad tiny channel / contraction dims to sublane multiples of 8 so the MXU
    # operands and the result stores are full-tile aligned (no masked vst/vld).
    nout_p = _round_up(nout, 8)
    k_p = _round_up(k, 8)
    if nout_p != nout or k_p != k:
        w = jnp.pad(w, ((0, nout_p - nout), (0, k_p - k)))
        vec = jnp.pad(vec, ((0, nout_p - nout),))
    if k_p != k:
        x = jnp.pad(x, ((0, k_p - k), (0, 0)))

    m128 = _round_up(m, 128)
    tm = m128 if m128 <= _TM else _TM          # whole-M block when it fits
    mp = _round_up(m, tm)
    if mp != m:
        x = jnp.pad(x, ((0, 0), (0, mp - m)))

    wb = w.astype(jnp.bfloat16)                # bf16 MXU operands, f32 accumulate
    xb = x.astype(jnp.bfloat16)
    v2 = vec.reshape(nout_p, 1).astype(jnp.float32)
    kernel = _matmul_shift_relu_kernel if relu else _matmul_bias_kernel
    out = pl.pallas_call(
        kernel,
        out_shape=jax.ShapeDtypeStruct((nout_p, mp), jnp.float32),
        grid=(mp // tm,),
        in_specs=[
            pl.BlockSpec((nout_p, k_p), lambda i: (0, 0)),
            pl.BlockSpec((k_p, tm), lambda i: (0, i)),
            pl.BlockSpec((nout_p, 1), lambda i: (0, 0)),
        ],
        out_specs=pl.BlockSpec((nout_p, tm), lambda i: (0, i)),
        compiler_params=pltpu.CompilerParams(dimension_semantics=("parallel",)),
    )(wb, xb, v2)
    return out[:nout, :m]


# ----------------------------------------------------------------------------
# Layer wrappers (layout plumbing only; compute is in the kernels above)
# ----------------------------------------------------------------------------
def conv_transpose_cnhw(x, w, b, k):
    """nn.ConvTranspose2d(kernel=k, stride=k). x: (Cin,N,H,W); w: (Cin,Cout,k,k)."""
    cin, n, h, ww = x.shape
    cout = w.shape[1]
    xflat = x.reshape(cin, n * h * ww)
    wmat = jnp.transpose(w, (2, 3, 1, 0)).reshape(k * k * cout, cin)
    btile = jnp.tile(b, k * k)
    y = _matmul_epilogue(wmat, xflat, btile, relu=False)   # (k*k*Cout, N*H*W)
    y = y.reshape(k, k, cout, n, h, ww).transpose(2, 3, 4, 0, 5, 1)
    return y.reshape(cout, n, h * k, ww * k)


def _im2col_cnhw(x, kh, kw, s):
    c, n, h, w = x.shape
    oh = (h - kh) // s + 1
    ow = (w - kw) // s + 1
    cols = []
    for ki in range(kh):
        for kj in range(kw):
            cols.append(x[:, :, ki:ki + (oh - 1) * s + 1:s, kj:kj + (ow - 1) * s + 1:s])
    xcol = jnp.concatenate(cols, axis=0)                   # (kh*kw*C, N, OH, OW)
    return xcol.reshape(kh * kw * c, n * oh * ow), oh, ow


def conv_bn_relu_cnhw(x, layer):
    """CNNBlock: valid Conv2d(bias=False) -> BatchNorm(eval, folded) -> ReLU."""
    w = layer["w"]                                         # (Cout, Cin, Kh, Kw) torch
    cout, cin, kh, kw = w.shape
    xcol, oh, ow = _im2col_cnhw(x, kh, kw, layer["stride"])
    scale = layer["gamma"] / jnp.sqrt(layer["var"] + _BN_EPS)
    shift = layer["beta"] - layer["mean"] * scale
    wmat = jnp.transpose(w, (0, 2, 3, 1)).reshape(cout, kh * kw * cin)
    wmat = wmat * scale[:, None]                           # fold BN scale into weights
    y = _matmul_epilogue(wmat, xcol, shift, relu=True)
    return y.reshape(cout, x.shape[1], oh, ow)


def conv1x1_cnhw(x, w, b):
    cin, n, h, ww = x.shape
    cout = w.shape[0]
    y = _matmul_epilogue(w[:, :, 0, 0], x.reshape(cin, n * h * ww), b, relu=False)
    return y.reshape(cout, n, h, ww)


def center_crop_cnhw(x, size):
    _, _, h, w = x.shape
    top = int(round((h - size) / 2.0))
    left = int(round((w - size) / 2.0))
    return x[:, :, top:top + size, left:left + size]


# ----------------------------------------------------------------------------
# Decoder parameter construction (mirrors the PyTorch __init__) and forward
# ----------------------------------------------------------------------------
def init_decoder_params(key, input_channels, exit_channels, up_k, parameters):
    layers = []
    ch = input_channels
    levels = len(parameters)
    for level in range(levels - 1):
        out_ch = ch // 2
        key, k1, k2 = jax.random.split(key, 3)
        layers.append(dict(
            type="up",
            w=0.1 * jax.random.normal(k1, (ch, out_ch, up_k, up_k), jnp.float32),
            b=0.1 * jax.random.normal(k2, (out_ch,), jnp.float32),
            k=up_k))
        for conv in range(len(parameters[level])):
            ksz, stride = parameters[level][conv]
            key, k1, k2, k3, k4, k5 = jax.random.split(key, 6)
            layers.append(dict(
                type="cnn",
                w=0.1 * jax.random.normal(k1, (out_ch, ch, ksz, ksz), jnp.float32),
                gamma=1.0 + 0.1 * jax.random.normal(k2, (out_ch,), jnp.float32),
                beta=0.1 * jax.random.normal(k3, (out_ch,), jnp.float32),
                mean=0.1 * jax.random.normal(k4, (out_ch,), jnp.float32),
                var=1.0 + 0.1 * jnp.abs(jax.random.normal(k5, (out_ch,), jnp.float32)),
                ksz=ksz, stride=stride))
            ch = out_ch
    key, k1, k2 = jax.random.split(key, 3)
    layers.append(dict(
        type="final",
        w=0.1 * jax.random.normal(k1, (exit_channels, ch, 1, 1), jnp.float32),
        b=0.1 * jax.random.normal(k2, (exit_channels,), jnp.float32)))
    return layers


def decoder_forward(layers, x, residuals):
    """x, residuals: CNHW (channels, batch, H, W). Pallas-backed forward."""
    residuals = list(residuals)
    prev_was_up = False
    for layer in layers:
        if prev_was_up:
            r = center_crop_cnhw(residuals.pop(-1), x.shape[2])
            x = jnp.concatenate([x, r], axis=0)
        if layer["type"] == "up":
            x = conv_transpose_cnhw(x, layer["w"], layer["b"], layer["k"])
            prev_was_up = True
        elif layer["type"] == "cnn":
            x = conv_bn_relu_cnhw(x, layer)
            prev_was_up = False
        else:
            x = conv1x1_cnhw(x, layer["w"], layer["b"])
            prev_was_up = False
    return x


# ----------------------------------------------------------------------------
# Pure-JAX reference (no Pallas) for verification (same bf16 operand casting)
# ----------------------------------------------------------------------------
def _conv2d_bn_relu_ref(x, layer):
    w = layer["w"]
    scale = layer["gamma"] / jnp.sqrt(layer["var"] + _BN_EPS)
    shift = layer["beta"] - layer["mean"] * scale
    wf = (w * scale[:, None, None, None]).astype(jnp.bfloat16)
    y = jax.lax.conv_general_dilated(
        x.astype(jnp.bfloat16), wf, (layer["stride"],) * 2, "VALID",
        dimension_numbers=("CNHW", "OIHW", "CNHW"),
        preferred_element_type=jnp.float32)
    return jnp.maximum(y + shift[:, None, None, None], 0.0)


def _conv_transpose_ref(x, w, b, k):
    cin, n, h, ww = x.shape
    cout = w.shape[1]
    y6 = jnp.einsum("cnhw,cokl->onhkwl",
                    x.astype(jnp.bfloat16), w.astype(jnp.bfloat16),
                    preferred_element_type=jnp.float32)
    return y6.reshape(cout, n, h * k, ww * k) + b[:, None, None, None]


def _conv1x1_ref(x, w, b):
    y = jnp.einsum("cnhw,oc->onhw",
                   x.astype(jnp.bfloat16), w[:, :, 0, 0].astype(jnp.bfloat16),
                   preferred_element_type=jnp.float32)
    return y + b[:, None, None, None]


def decoder_ref(layers, x, residuals):
    residuals = list(residuals)
    prev_was_up = False
    for layer in layers:
        if prev_was_up:
            r = center_crop_cnhw(residuals.pop(-1), x.shape[2])
            x = jnp.concatenate([x, r], axis=0)
        if layer["type"] == "up":
            x = _conv_transpose_ref(x, layer["w"], layer["b"], layer["k"])
            prev_was_up = True
        elif layer["type"] == "cnn":
            x = _conv2d_bn_relu_ref(x, layer)
            prev_was_up = False
        else:
            x = _conv1x1_ref(x, layer["w"], layer["b"])
            prev_was_up = False
    return x


# ----------------------------------------------------------------------------
if __name__ == "__main__":
    # Decoder(input_channels=8, exit_channels=2, uppool_kernelsize=2,
    #         parameters=[[(3,1),(3,1)], [(3,1),(3,1)], []])   -> 2 up-levels
    input_channels, exit_channels, up_k = 8, 2, 2
    parameters = [[(3, 1), (3, 1)], [(3, 1), (3, 1)], []]

    key = jax.random.PRNGKey(0)
    key, kp, kx, kr0, kr1 = jax.random.split(key, 5)
    layers = init_decoder_params(kp, input_channels, exit_channels, up_k, parameters)

    # PyTorch-convention NCHW inputs.
    x_nchw = jax.random.normal(kx, (2, 8, 8, 8), jnp.float32)       # (N, C=8, 8, 8)
    r0_nchw = jax.random.normal(kr0, (2, 4, 18, 18), jnp.float32)   # skip for level 0
    r1_nchw = jax.random.normal(kr1, (2, 2, 28, 28), jnp.float32)   # skip for level 1

    def to_cnhw(t):
        return jnp.transpose(t, (1, 0, 2, 3))

    x = to_cnhw(x_nchw)
    residuals = [to_cnhw(r1_nchw), to_cnhw(r0_nchw)]  # popped from the end

    fwd = jax.jit(lambda xx, ra, rb: decoder_forward(layers, xx, [ra, rb]))
    out_cnhw = fwd(x, residuals[0], residuals[1])
    out_nchw = jnp.transpose(out_cnhw, (1, 0, 2, 3))
    jax.block_until_ready(out_nchw)

    assert out_nchw.shape == (2, 2, 20, 20), out_nchw.shape

    ref_cnhw = decoder_ref(layers, x, residuals)
    err = float(jnp.max(jnp.abs(out_cnhw - ref_cnhw)))
    # bf16 MXU operands on both paths; differences are reduction-order level.
    assert err < 2e-2, f"mismatch vs reference: {err}"

    print("KERNEL_OK")
</pallas_src>

<mosaic_0001>
module attributes {stable_mosaic.version = 11 : i64} {
  func.func @_matmul_bias_kernel(%arg0: i32, %arg1: memref<16x8xbf16, #tpu.memory_space<vmem>>, %arg2: memref<8x128xbf16, #tpu.memory_space<vmem>>, %arg3: memref<16x1xf32, #tpu.memory_space<vmem>>, %arg4: memref<16x128xf32, #tpu.memory_space<vmem>>) attributes {dimension_semantics = [#tpu.dimension_semantics<parallel>], iteration_bounds = array<i64: 1>, scalar_prefetch = 0 : i64, scratch_operands = 0 : i64, tpu.core_type = #tpu.core_type<tc>, window_params = [{pipeline_mode = #tpu.pipeline_mode<synchronous>, transform_indices = @transform_0, window_bounds = array<i64: 16, 8>}, {transform_indices = @transform_1, window_bounds = array<i64: 8, 128>}, {pipeline_mode = #tpu.pipeline_mode<synchronous>, transform_indices = @transform_2, window_bounds = array<i64: 16, 1>}, {transform_indices = @transform_3, window_bounds = array<i64: 16, 128>}]} {
    %c0 = arith.constant 0 : index
    %c0_0 = arith.constant 0 : index
    %0 = vector.load %arg1[%c0, %c0_0] : memref<16x8xbf16, #tpu.memory_space<vmem>>, vector<16x8xbf16>
    %c0_1 = arith.constant 0 : index
    %c0_2 = arith.constant 0 : index
    %1 = vector.load %arg2[%c0_1, %c0_2] : memref<8x128xbf16, #tpu.memory_space<vmem>>, vector<8x128xbf16>
    %cst = arith.constant dense<0.000000e+00> : vector<16x128xf32>
    %2 = tpu.matmul %0, %1, %cst {dimension_numbers = #tpu.dot_dimension_numbers<[1], [0], [0], [1], [0, 0, 1, 1], [], []>} : vector<16x8xbf16>, vector<8x128xbf16>, vector<16x128xf32> -> vector<16x128xf32>
    %c0_3 = arith.constant 0 : index
    %c0_4 = arith.constant 0 : index
    %3 = vector.load %arg3[%c0_3, %c0_4] : memref<16x1xf32, #tpu.memory_space<vmem>>, vector<16x1xf32>
    %4 = vector.broadcast %3 : vector<16x1xf32> to vector<16x128xf32>
    %5 = arith.addf %2, %4 : vector<16x128xf32>
    %c0_5 = arith.constant 0 : index
    %c0_6 = arith.constant 0 : index
    %6 = vector.load %arg4[%c0_5, %c0_6] : memref<16x128xf32, #tpu.memory_space<vmem>>, vector<16x128xf32>
    tpu.vector_store %arg4[%c0_5, %c0_6], %5 {strides = array<i32>} : memref<16x128xf32, #tpu.memory_space<vmem>>, vector<16x128xf32>,
    return
  }
  func.func @transform_0(%arg0: i32) -> (i32, i32) {
    %c0_i32 = arith.constant 0 : i32
    %c0_i32_0 = arith.constant 0 : i32
    %c0_i32_1 = arith.constant 0 : i32
    return %c0_i32, %c0_i32_0 : i32, i32
  }
  func.func @transform_1(%arg0: i32) -> (i32, i32) {
    %c0_i32 = arith.constant 0 : i32
    %c0_i32_0 = arith.constant 0 : i32
    return %c0_i32, %arg0 : i32, i32
  }
  func.func @transform_2(%arg0: i32) -> (i32, i32) {
    %c0_i32 = arith.constant 0 : i32
    %c0_i32_0 = arith.constant 0 : i32
    %c0_i32_1 = arith.constant 0 : i32
    return %c0_i32, %c0_i32_0 : i32, i32
  }
  func.func @transform_3(%arg0: i32) -> (i32, i32) {
    %c0_i32 = arith.constant 0 : i32
    %c0_i32_0 = arith.constant 0 : i32
    return %c0_i32, %arg0 : i32, i32
  }
}

module attributes {stable_mosaic.version = 11 : i64} {
  func.func @_matmul_shift_relu_kernel(%arg0: i32, %arg1: memref<8x72xbf16, #tpu.memory_space<vmem>>, %arg2: memref<72x512xbf16, #tpu.memory_space<vmem>>, %arg3: memref<8x1xf32, #tpu.memory_space<vmem>>, %arg4: memref<8x512xf32, #tpu.memory_space<vmem>>) attributes {dimension_semantics = [#tpu.dimension_semantics<parallel>], iteration_bounds = array<i64: 1>, scalar_prefetch = 0 : i64, scratch_operands = 0 : i64, tpu.core_type = #tpu.core_type<tc>, window_params = [{pipeline_mode = #tpu.pipeline_mode<synchronous>, transform_indices = @transform_0, window_bounds = array<i64: 8, 72>}, {transform_indices = @transform_1, window_bounds = array<i64: 72, 512>}, {pipeline_mode = #tpu.pipeline_mode<synchronous>, transform_indices = @transform_2, window_bounds = array<i64: 8, 1>}, {transform_indices = @transform_3, window_bounds = array<i64: 8, 512>}]} {
    %c0 = arith.constant 0 : index
    %c0_0 = arith.constant 0 : index
    %0 = vector.load %arg1[%c0, %c0_0] : memref<8x72xbf16, #tpu.memory_space<vmem>>, vector<8x72xbf16>
    %c0_1 = arith.constant 0 : index
    %c0_2 = arith.constant 0 : index
    %1 = vector.load %arg2[%c0_1, %c0_2] : memref<72x512xbf16, #tpu.memory_space<vmem>>, vector<72x512xbf16>
    %cst = arith.constant dense<0.000000e+00> : vector<8x512xf32>
    %2 = tpu.matmul %0, %1, %cst {dimension_numbers = #tpu.dot_dimension_numbers<[1], [0], [0], [1], [0, 0, 1, 1], [], []>} : vector<8x72xbf16>, vector<72x512xbf16>, vector<8x512xf32> -> vector<8x512xf32>
    %c0_3 = arith.constant 0 : index
    %c0_4 = arith.constant 0 : index
    %3 = vector.load %arg3[%c0_3, %c0_4] : memref<8x1xf32, #tpu.memory_space<vmem>>, vector<8x1xf32>
    %4 = vector.broadcast %3 : vector<8x1xf32> to vector<8x512xf32>
    %5 = arith.addf %2, %4 : vector<8x512xf32>
    %cst_5 = arith.constant 0.000000e+00 : f32
    %6 = vector.broadcast %cst_5 : f32 to vector<8x512xf32>
    %7 = arith.maximumf %5, %6 : vector<8x512xf32>
    %c0_6 = arith.constant 0 : index
    %c0_7 = arith.constant 0 : index
    %8 = vector.load %arg4[%c0_6, %c0_7] : memref<8x512xf32, #tpu.memory_space<vmem>>, vector<8x512xf32>
    tpu.vector_store %arg4[%c0_6, %c0_7], %7 {strides = array<i32>} : memref<8x512xf32, #tpu.memory_space<vmem>>, vector<8x512xf32>,
    return
  }
  func.func @transform_0(%arg0: i32) -> (i32, i32) {
    %c0_i32 = arith.constant 0 : i32
    %c0_i32_0 = arith.constant 0 : i32
    %c0_i32_1 = arith.constant 0 : i32
    return %c0_i32, %c0_i32_0 : i32, i32
  }
  func.func @transform_1(%arg0: i32) -> (i32, i32) {
    %c0_i32 = arith.constant 0 : i32
    %c0_i32_0 = arith.constant 0 : i32
    return %c0_i32, %arg0 : i32, i32
  }
  func.func @transform_2(%arg0: i32) -> (i32, i32) {
    %c0_i32 = arith.constant 0 : i32
    %c0_i32_0 = arith.constant 0 : i32
    %c0_i32_1 = arith.constant 0 : i32
    return %c0_i32, %c0_i32_0 : i32, i32
  }
  func.func @transform_3(%arg0: i32) -> (i32, i32) {
    %c0_i32 = arith.constant 0 : i32
    %c0_i32_0 = arith.constant 0 : i32
    return %c0_i32, %arg0 : i32, i32
  }
}

module attributes {stable_mosaic.version = 11 : i64} {
  func.func @_matmul_shift_relu_kernel(%arg0: i32, %arg1: memref<8x40xbf16, #tpu.memory_space<vmem>>, %arg2: memref<40x384xbf16, #tpu.memory_space<vmem>>, %arg3: memref<8x1xf32, #tpu.memory_space<vmem>>, %arg4: memref<8x384xf32, #tpu.memory_space<vmem>>) attributes {dimension_semantics = [#tpu.dimension_semantics<parallel>], iteration_bounds = array<i64: 1>, scalar_prefetch = 0 : i64, scratch_operands = 0 : i64, tpu.core_type = #tpu.core_type<tc>, window_params = [{pipeline_mode = #tpu.pipeline_mode<synchronous>, transform_indices = @transform_0, window_bounds = array<i64: 8, 40>}, {transform_indices = @transform_1, window_bounds = array<i64: 40, 384>}, {pipeline_mode = #tpu.pipeline_mode<synchronous>, transform_indices = @transform_2, window_bounds = array<i64: 8, 1>}, {transform_indices = @transform_3, window_bounds = array<i64: 8, 384>}]} {
    %c0 = arith.constant 0 : index
    %c0_0 = arith.constant 0 : index
    %0 = vector.load %arg1[%c0, %c0_0] : memref<8x40xbf16, #tpu.memory_space<vmem>>, vector<8x40xbf16>
    %c0_1 = arith.constant 0 : index
    %c0_2 = arith.constant 0 : index
    %1 = vector.load %arg2[%c0_1, %c0_2] : memref<40x384xbf16, #tpu.memory_space<vmem>>, vector<40x384xbf16>
    %cst = arith.constant dense<0.000000e+00> : vector<8x384xf32>
    %2 = tpu.matmul %0, %1, %cst {dimension_numbers = #tpu.dot_dimension_numbers<[1], [0], [0], [1], [0, 0, 1, 1], [], []>} : vector<8x40xbf16>, vector<40x384xbf16>, vector<8x384xf32> -> vector<8x384xf32>
    %c0_3 = arith.constant 0 : index
    %c0_4 = arith.constant 0 : index
    %3 = vector.load %arg3[%c0_3, %c0_4] : memref<8x1xf32, #tpu.memory_space<vmem>>, vector<8x1xf32>
    %4 = vector.broadcast %3 : vector<8x1xf32> to vector<8x384xf32>
    %5 = arith.addf %2, %4 : vector<8x384xf32>
    %cst_5 = arith.constant 0.000000e+00 : f32
    %6 = vector.broadcast %cst_5 : f32 to vector<8x384xf32>
    %7 = arith.maximumf %5, %6 : vector<8x384xf32>
    %c0_6 = arith.constant 0 : index
    %c0_7 = arith.constant 0 : index
    %8 = vector.load %arg4[%c0_6, %c0_7] : memref<8x384xf32, #tpu.memory_space<vmem>>, vector<8x384xf32>
    tpu.vector_store %arg4[%c0_6, %c0_7], %7 {strides = array<i32>} : memref<8x384xf32, #tpu.memory_space<vmem>>, vector<8x384xf32>,
    return
  }
  func.func @transform_0(%arg0: i32) -> (i32, i32) {
    %c0_i32 = arith.constant 0 : i32
    %c0_i32_0 = arith.constant 0 : i32
    %c0_i32_1 = arith.constant 0 : i32
    return %c0_i32, %c0_i32_0 : i32, i32
  }
  func.func @transform_1(%arg0: i32) -> (i32, i32) {
    %c0_i32 = arith.constant 0 : i32
    %c0_i32_0 = arith.constant 0 : i32
    return %c0_i32, %arg0 : i32, i32
  }
  func.func @transform_2(%arg0: i32) -> (i32, i32) {
    %c0_i32 = arith.constant 0 : i32
    %c0_i32_0 = arith.constant 0 : i32
    %c0_i32_1 = arith.constant 0 : i32
    return %c0_i32, %c0_i32_0 : i32, i32
  }
  func.func @transform_3(%arg0: i32) -> (i32, i32) {
    %c0_i32 = arith.constant 0 : i32
    %c0_i32_0 = arith.constant 0 : i32
    return %c0_i32, %arg0 : i32, i32
  }
}

module attributes {stable_mosaic.version = 11 : i64} {
  func.func @_matmul_bias_kernel(%arg0: i32, %arg1: memref<8x8xbf16, #tpu.memory_space<vmem>>, %arg2: memref<8x384xbf16, #tpu.memory_space<vmem>>, %arg3: memref<8x1xf32, #tpu.memory_space<vmem>>, %arg4: memref<8x384xf32, #tpu.memory_space<vmem>>) attributes {dimension_semantics = [#tpu.dimension_semantics<parallel>], iteration_bounds = array<i64: 1>, scalar_prefetch = 0 : i64, scratch_operands = 0 : i64, tpu.core_type = #tpu.core_type<tc>, window_params = [{pipeline_mode = #tpu.pipeline_mode<synchronous>, transform_indices = @transform_0, window_bounds = array<i64: 8, 8>}, {transform_indices = @transform_1, window_bounds = array<i64: 8, 384>}, {pipeline_mode = #tpu.pipeline_mode<synchronous>, transform_indices = @transform_2, window_bounds = array<i64: 8, 1>}, {transform_indices = @transform_3, window_bounds = array<i64: 8, 384>}]} {
    %c0 = arith.constant 0 : index
    %c0_0 = arith.constant 0 : index
    %0 = vector.load %arg1[%c0, %c0_0] : memref<8x8xbf16, #tpu.memory_space<vmem>>, vector<8x8xbf16>
    %c0_1 = arith.constant 0 : index
    %c0_2 = arith.constant 0 : index
    %1 = vector.load %arg2[%c0_1, %c0_2] : memref<8x384xbf16, #tpu.memory_space<vmem>>, vector<8x384xbf16>
    %cst = arith.constant dense<0.000000e+00> : vector<8x384xf32>
    %2 = tpu.matmul %0, %1, %cst {dimension_numbers = #tpu.dot_dimension_numbers<[1], [0], [0], [1], [0, 0, 1, 1], [], []>} : vector<8x8xbf16>, vector<8x384xbf16>, vector<8x384xf32> -> vector<8x384xf32>
    %c0_3 = arith.constant 0 : index
    %c0_4 = arith.constant 0 : index
    %3 = vector.load %arg3[%c0_3, %c0_4] : memref<8x1xf32, #tpu.memory_space<vmem>>, vector<8x1xf32>
    %4 = vector.broadcast %3 : vector<8x1xf32> to vector<8x384xf32>
    %5 = arith.addf %2, %4 : vector<8x384xf32>
    %c0_5 = arith.constant 0 : index
    %c0_6 = arith.constant 0 : index
    %6 = vector.load %arg4[%c0_5, %c0_6] : memref<8x384xf32, #tpu.memory_space<vmem>>, vector<8x384xf32>
    tpu.vector_store %arg4[%c0_5, %c0_6], %5 {strides = array<i32>} : memref<8x384xf32, #tpu.memory_space<vmem>>, vector<8x384xf32>,
    return
  }
  func.func @transform_0(%arg0: i32) -> (i32, i32) {
    %c0_i32 = arith.constant 0 : i32
    %c0_i32_0 = arith.constant 0 : i32
    %c0_i32_1 = arith.constant 0 : i32
    return %c0_i32, %c0_i32_0 : i32, i32
  }
  func.func @transform_1(%arg0: i32) -> (i32, i32) {
    %c0_i32 = arith.constant 0 : i32
    %c0_i32_0 = arith.constant 0 : i32
    return %c0_i32, %arg0 : i32, i32
  }
  func.func @transform_2(%arg0: i32) -> (i32, i32) {
    %c0_i32 = arith.constant 0 : i32
    %c0_i32_0 = arith.constant 0 : i32
    %c0_i32_1 = arith.constant 0 : i32
    return %c0_i32, %c0_i32_0 : i32, i32
  }
  func.func @transform_3(%arg0: i32) -> (i32, i32) {
    %c0_i32 = arith.constant 0 : i32
    %c0_i32_0 = arith.constant 0 : i32
    return %c0_i32, %arg0 : i32, i32
  }
}

module attributes {stable_mosaic.version = 11 : i64} {
  func.func @_matmul_shift_relu_kernel(%arg0: i32, %arg1: memref<8x40xbf16, #tpu.memory_space<vmem>>, %arg2: memref<40x1024xbf16, #tpu.memory_space<vmem>>, %arg3: memref<8x1xf32, #tpu.memory_space<vmem>>, %arg4: memref<8x1024xf32, #tpu.memory_space<vmem>>) attributes {dimension_semantics = [#tpu.dimension_semantics<parallel>], iteration_bounds = array<i64: 1>, scalar_prefetch = 0 : i64, scratch_operands = 0 : i64, tpu.core_type = #tpu.core_type<tc>, window_params = [{pipeline_mode = #tpu.pipeline_mode<synchronous>, transform_indices = @transform_0, window_bounds = array<i64: 8, 40>}, {transform_indices = @transform_1, window_bounds = array<i64: 40, 1024>}, {pipeline_mode = #tpu.pipeline_mode<synchronous>, transform_indices = @transform_2, window_bounds = array<i64: 8, 1>}, {transform_indices = @transform_3, window_bounds = array<i64: 8, 1024>}]} {
    %c0 = arith.constant 0 : index
    %c0_0 = arith.constant 0 : index
    %0 = vector.load %arg1[%c0, %c0_0] : memref<8x40xbf16, #tpu.memory_space<vmem>>, vector<8x40xbf16>
    %c0_1 = arith.constant 0 : index
    %c0_2 = arith.constant 0 : index
    %1 = vector.load %arg2[%c0_1, %c0_2] : memref<40x1024xbf16, #tpu.memory_space<vmem>>, vector<40x1024xbf16>
    %cst = arith.constant dense<0.000000e+00> : vector<8x1024xf32>
    %2 = tpu.matmul %0, %1, %cst {dimension_numbers = #tpu.dot_dimension_numbers<[1], [0], [0], [1], [0, 0, 1, 1], [], []>} : vector<8x40xbf16>, vector<40x1024xbf16>, vector<8x1024xf32> -> vector<8x1024xf32>
    %c0_3 = arith.constant 0 : index
    %c0_4 = arith.constant 0 : index
    %3 = vector.load %arg3[%c0_3, %c0_4] : memref<8x1xf32, #tpu.memory_space<vmem>>, vector<8x1xf32>
    %4 = vector.broadcast %3 : vector<8x1xf32> to vector<8x1024xf32>
    %5 = arith.addf %2, %4 : vector<8x1024xf32>
    %cst_5 = arith.constant 0.000000e+00 : f32
    %6 = vector.broadcast %cst_5 : f32 to vector<8x1024xf32>
    %7 = arith.maximumf %5, %6 : vector<8x1024xf32>
    %c0_6 = arith.constant 0 : index
    %c0_7 = arith.constant 0 : index
    %8 = vector.load %arg4[%c0_6, %c0_7] : memref<8x1024xf32, #tpu.memory_space<vmem>>, vector<8x1024xf32>
    tpu.vector_store %arg4[%c0_6, %c0_7], %7 {strides = array<i32>} : memref<8x1024xf32, #tpu.memory_space<vmem>>, vector<8x1024xf32>,
    return
  }
  func.func @transform_0(%arg0: i32) -> (i32, i32) {
    %c0_i32 = arith.constant 0 : i32
    %c0_i32_0 = arith.constant 0 : i32
    %c0_i32_1 = arith.constant 0 : i32
    return %c0_i32, %c0_i32_0 : i32, i32
  }
  func.func @transform_1(%arg0: i32) -> (i32, i32) {
    %c0_i32 = arith.constant 0 : i32
    %c0_i32_0 = arith.constant 0 : i32
    return %c0_i32, %arg0 : i32, i32
  }
  func.func @transform_2(%arg0: i32) -> (i32, i32) {
    %c0_i32 = arith.constant 0 : i32
    %c0_i32_0 = arith.constant 0 : i32
    %c0_i32_1 = arith.constant 0 : i32
    return %c0_i32, %c0_i32_0 : i32, i32
  }
  func.func @transform_3(%arg0: i32) -> (i32, i32) {
    %c0_i32 = arith.constant 0 : i32
    %c0_i32_0 = arith.constant 0 : i32
    return %c0_i32, %arg0 : i32, i32
  }
}

module attributes {stable_mosaic.version = 11 : i64} {
  func.func @_matmul_shift_relu_kernel(%arg0: i32, %arg1: memref<8x24xbf16, #tpu.memory_space<vmem>>, %arg2: memref<24x896xbf16, #tpu.memory_space<vmem>>, %arg3: memref<8x1xf32, #tpu.memory_space<vmem>>, %arg4: memref<8x896xf32, #tpu.memory_space<vmem>>) attributes {dimension_semantics = [#tpu.dimension_semantics<parallel>], iteration_bounds = array<i64: 1>, scalar_prefetch = 0 : i64, scratch_operands = 0 : i64, tpu.core_type = #tpu.core_type<tc>, window_params = [{pipeline_mode = #tpu.pipeline_mode<synchronous>, transform_indices = @transform_0, window_bounds = array<i64: 8, 24>}, {transform_indices = @transform_1, window_bounds = array<i64: 24, 896>}, {pipeline_mode = #tpu.pipeline_mode<synchronous>, transform_indices = @transform_2, window_bounds = array<i64: 8, 1>}, {transform_indices = @transform_3, window_bounds = array<i64: 8, 896>}]} {
    %c0 = arith.constant 0 : index
    %c0_0 = arith.constant 0 : index
    %0 = vector.load %arg1[%c0, %c0_0] : memref<8x24xbf16, #tpu.memory_space<vmem>>, vector<8x24xbf16>
    %c0_1 = arith.constant 0 : index
    %c0_2 = arith.constant 0 : index
    %1 = vector.load %arg2[%c0_1, %c0_2] : memref<24x896xbf16, #tpu.memory_space<vmem>>, vector<24x896xbf16>
    %cst = arith.constant dense<0.000000e+00> : vector<8x896xf32>
    %2 = tpu.matmul %0, %1, %cst {dimension_numbers = #tpu.dot_dimension_numbers<[1], [0], [0], [1], [0, 0, 1, 1], [], []>} : vector<8x24xbf16>, vector<24x896xbf16>, vector<8x896xf32> -> vector<8x896xf32>
    %c0_3 = arith.constant 0 : index
    %c0_4 = arith.constant 0 : index
    %3 = vector.load %arg3[%c0_3, %c0_4] : memref<8x1xf32, #tpu.memory_space<vmem>>, vector<8x1xf32>
    %4 = vector.broadcast %3 : vector<8x1xf32> to vector<8x896xf32>
    %5 = arith.addf %2, %4 : vector<8x896xf32>
    %cst_5 = arith.constant 0.000000e+00 : f32
    %6 = vector.broadcast %cst_5 : f32 to vector<8x896xf32>
    %7 = arith.maximumf %5, %6 : vector<8x896xf32>
    %c0_6 = arith.constant 0 : index
    %c0_7 = arith.constant 0 : index
    %8 = vector.load %arg4[%c0_6, %c0_7] : memref<8x896xf32, #tpu.memory_space<vmem>>, vector<8x896xf32>
    tpu.vector_store %arg4[%c0_6, %c0_7], %7 {strides = array<i32>} : memref<8x896xf32, #tpu.memory_space<vmem>>, vector<8x896xf32>,
    return
  }
  func.func @transform_0(%arg0: i32) -> (i32, i32) {
    %c0_i32 = arith.constant 0 : i32
    %c0_i32_0 = arith.constant 0 : i32
    %c0_i32_1 = arith.constant 0 : i32
    return %c0_i32, %c0_i32_0 : i32, i32
  }
  func.func @transform_1(%arg0: i32) -> (i32, i32) {
    %c0_i32 = arith.constant 0 : i32
    %c0_i32_0 = arith.constant 0 : i32
    return %c0_i32, %arg0 : i32, i32
  }
  func.func @transform_2(%arg0: i32) -> (i32, i32) {
    %c0_i32 = arith.constant 0 : i32
    %c0_i32_0 = arith.constant 0 : i32
    %c0_i32_1 = arith.constant 0 : i32
    return %c0_i32, %c0_i32_0 : i32, i32
  }
  func.func @transform_3(%arg0: i32) -> (i32, i32) {
    %c0_i32 = arith.constant 0 : i32
    %c0_i32_0 = arith.constant 0 : i32
    return %c0_i32, %arg0 : i32, i32
  }
}

module attributes {stable_mosaic.version = 11 : i64} {
  func.func @_matmul_bias_kernel(%arg0: i32, %arg1: memref<8x8xbf16, #tpu.memory_space<vmem>>, %arg2: memref<8x896xbf16, #tpu.memory_space<vmem>>, %arg3: memref<8x1xf32, #tpu.memory_space<vmem>>, %arg4: memref<8x896xf32, #tpu.memory_space<vmem>>) attributes {dimension_semantics = [#tpu.dimension_semantics<parallel>], iteration_bounds = array<i64: 1>, scalar_prefetch = 0 : i64, scratch_operands = 0 : i64, tpu.core_type = #tpu.core_type<tc>, window_params = [{pipeline_mode = #tpu.pipeline_mode<synchronous>, transform_indices = @transform_0, window_bounds = array<i64: 8, 8>}, {transform_indices = @transform_1, window_bounds = array<i64: 8, 896>}, {pipeline_mode = #tpu.pipeline_mode<synchronous>, transform_indices = @transform_2, window_bounds = array<i64: 8, 1>}, {transform_indices = @transform_3, window_bounds = array<i64: 8, 896>}]} {
    %c0 = arith.constant 0 : index
    %c0_0 = arith.constant 0 : index
    %0 = vector.load %arg1[%c0, %c0_0] : memref<8x8xbf16, #tpu.memory_space<vmem>>, vector<8x8xbf16>
    %c0_1 = arith.constant 0 : index
    %c0_2 = arith.constant 0 : index
    %1 = vector.load %arg2[%c0_1, %c0_2] : memref<8x896xbf16, #tpu.memory_space<vmem>>, vector<8x896xbf16>
    %cst = arith.constant dense<0.000000e+00> : vector<8x896xf32>
    %2 = tpu.matmul %0, %1, %cst {dimension_numbers = #tpu.dot_dimension_numbers<[1], [0], [0], [1], [0, 0, 1, 1], [], []>} : vector<8x8xbf16>, vector<8x896xbf16>, vector<8x896xf32> -> vector<8x896xf32>
    %c0_3 = arith.constant 0 : index
    %c0_4 = arith.constant 0 : index
    %3 = vector.load %arg3[%c0_3, %c0_4] : memref<8x1xf32, #tpu.memory_space<vmem>>, vector<8x1xf32>
    %4 = vector.broadcast %3 : vector<8x1xf32> to vector<8x896xf32>
    %5 = arith.addf %2, %4 : vector<8x896xf32>
    %c0_5 = arith.constant 0 : index
    %c0_6 = arith.constant 0 : index
    %6 = vector.load %arg4[%c0_5, %c0_6] : memref<8x896xf32, #tpu.memory_space<vmem>>, vector<8x896xf32>
    tpu.vector_store %arg4[%c0_5, %c0_6], %5 {strides = array<i32>} : memref<8x896xf32, #tpu.memory_space<vmem>>, vector<8x896xf32>,
    return
  }
  func.func @transform_0(%arg0: i32) -> (i32, i32) {
    %c0_i32 = arith.constant 0 : i32
    %c0_i32_0 = arith.constant 0 : i32
    %c0_i32_1 = arith.constant 0 : i32
    return %c0_i32, %c0_i32_0 : i32, i32
  }
  func.func @transform_1(%arg0: i32) -> (i32, i32) {
    %c0_i32 = arith.constant 0 : i32
    %c0_i32_0 = arith.constant 0 : i32
    return %c0_i32, %arg0 : i32, i32
  }
  func.func @transform_2(%arg0: i32) -> (i32, i32) {
    %c0_i32 = arith.constant 0 : i32
    %c0_i32_0 = arith.constant 0 : i32
    %c0_i32_1 = arith.constant 0 : i32
    return %c0_i32, %c0_i32_0 : i32, i32
  }
  func.func @transform_3(%arg0: i32) -> (i32, i32) {
    %c0_i32 = arith.constant 0 : i32
    %c0_i32_0 = arith.constant 0 : i32
    return %c0_i32, %arg0 : i32, i32
  }
}

</mosaic_0001>

<llo_original>
// kernel: tile.10
$region0: #{tile.10}
  #allocation0 [shape = 's32[1]{0}', space=sflag, size = 0x4, scoped, tag = 'scoped memory for tile.10']
  %s0 = inlined_call_operand.vmem [shape: f32[4], index: 0, kind: input, shape index: {}]
  %s1 = inlined_call_operand.vmem [shape: f32[4,4], index: 1, kind: output, shape index: {}]
  // Predicated region
  $region2: #{tile.10} parent=0 // pred_check
    _
  $region3: #{tile.10} parent=0 // pred_check_branch
    %3 = sbr.rel (0) target = $region5
  $region4: #{tile.10} parent=0 // pred_region
    _
  $region5: #{tile.10} parent=0 // pred_fallthru
    _
  %v4 = vld [vmem:[%s0] ss:$0 sm:$0xff]
  %5 = vst [vmem:[%s1] sm:$0xf] %v4

// kernel: tile.0
$region0: #{tile.0}
  %s0 = inlined_call_operand.vmem [shape: f32[4,4], index: 0, kind: input, shape index: {}]
  %s1 = inlined_call_operand.vmem [shape: f32[16,1], index: 1, kind: output, shape index: {}]
  $region1: #{tile.0} parent=0
    #allocation0 [shape = 'u8[4096]{0}', space=vmem, size = 0x1000, scoped, tag = 'scoped mem for input reshape']
    %s3 = sshll.u32 1, 4
    %s4 = ssub.s32 %s3, 1
    %v5 = vld [vmem:[%s0] sm:%s4]
    %6 = vst [vmem:[#allocation0] sm:%s4] %v5
    %v7 = vld [vmem:[#allocation0] sm:$0xf]
    %vm8 = vcmask 7168
    %9 = vst.msk [vmem:[%s1] ss:$4 sm:$0xf] %vm8, %v7
    %v10 = vld [vmem:[#allocation0] sm:$0xf]
    %11 = vrot.lane.b32.xlu0 %v10, 127
    %v12 = vpop.permute.xlu0 %11
    %vm13 = vcmask 7168
    %s14 = scalar_lea.vmem %s1, 1
    %15 = vst.msk [vmem:[%s14] ss:$4 sm:$0xf] %vm13, %v12
    %v16 = vld [vmem:[#allocation0] sm:$0xf]
    %17 = vrot.lane.b32.xlu0 %v16, 126
    %v18 = vpop.permute.xlu0 %17
    %vm19 = vcmask 7168
    %s20 = scalar_lea.vmem %s1, 2
    %21 = vst.msk [vmem:[%s20] ss:$4 sm:$0xf] %vm19, %v18
    %v22 = vld [vmem:[#allocation0] sm:$0xf]
    %23 = vrot.lane.b32.xlu0 %v22, 125
    %v24 = vpop.permute.xlu0 %23
    %vm25 = vcmask 7168
    %s26 = scalar_lea.vmem %s1, 3
    %27 = vst.msk [vmem:[%s26] ss:$4 sm:$0xf] %vm25, %v24

// kernel: _lambda_.7
$region0: #{_lambda_.7}
  #allocation0 [shape = 'u32[]', space=smem, size = 0x4, offset = 0x4, fixed_abs, tag = 'smem constant byte address 0x4 - core index']
  #allocation1 [shape = 'u32[144,128]{1,0:T(1,128)}', space=vmem, size = 0x12000, scoped, tag = 'internal scratch']
  %s0 = inlined_call_operand.vmem [shape: bf16[16,8], index: 0, kind: input, shape index: {}]
  %s1 = inlined_call_operand.vmem [shape: bf16[8,128], index: 1, kind: input, shape index: {}]
  %s2 = inlined_call_operand.vmem [shape: f32[16,1], index: 2, kind: input, shape index: {}]
  %s3 = inlined_call_operand.vmem [shape: f32[16,128], index: 3, kind: output, shape index: {}]
  %s4 = sld [smem:[#allocation0]]
  $region22: #{_lambda_.7} parent=0
    _
  %s6 = ssub.s32 1, %s4
  %s7 = scalar_select 0, %s6, %s4
  // Predicated region
  $region2: #{_lambda_.7} parent=0 // pred_check
    _
  $region3: #{_lambda_.7} parent=0 // pred_check_branch
    %9 = sbr.rel (0) target = $region5
  $region4: #{_lambda_.7} parent=0 // pred_region
    _
  $region5: #{_lambda_.7} parent=0 // pred_fallthru
    _
  // Predicated region
  $region6: #{_lambda_.7} parent=0 // pred_check
    _
  $region7: #{_lambda_.7} parent=0 // pred_check_branch
    %11 = sbr.rel (0) target = $region9
  $region8: #{_lambda_.7} parent=0 // pred_region
    _
  $region9: #{_lambda_.7} parent=0 // pred_fallthru
    _
  // Predicated region
  $region10: #{_lambda_.7} parent=0 // pred_check
    _
  $region11: #{_lambda_.7} parent=0 // pred_check_branch
    %13 = sbr.rel (0) target = $region13
  $region12: #{_lambda_.7} parent=0 // pred_region
    _
  $region13: #{_lambda_.7} parent=0 // pred_fallthru
    _
  %v15 = vld [vmem:[%s0] sm:$0xf]
  %v16 = vld [vmem:[%s0 + $0x4] sm:$0xf]
  %v17 = vld [vmem:[%s1] sm:$0xf]
  %v18 = vld [vmem:[%s2] sm:$0xff]
  %v19 = vld [vmem:[%s2 + $0x8] sm:$0xff]
  %21 = vset.pattern.permute.xlu0 0
  %22 = vperm.xlu0 %21, %v18
  %v23 = vpop.permute.xlu0 %22
  %26 = vset.pattern.permute.xlu0 0
  %27 = vperm.xlu0 %26, %v19
  %v28 = vpop.permute.xlu0 %27
  %v32 = vunpack.c.l.b16 %v15
  %v33 = vunpack.c.l.b16 %v16
  %v34 = vpack.c.b16 %v33, %v32
  %vm35 = vcmask 64512
  %v37 = vsel %vm35, %v34, 0
  %vm39 = vcmask 1043456
  %v41 = vsel %vm39, %v17, 0
  %43 = vmatprep.subr.bf16.mxu0 0
  %44 = vmatpush1.bf16.msra.mxu0 0
  %45 = vmatprep.subr.bf16.mxu0 0
  %46 = vmatpush1.bf16.msra.mxu0 0
  %47 = vmatprep.subr.bf16.mxu0 0
  %48 = vmatpush1.bf16.msra.mxu0 0
  %49 = vmatprep.subr.bf16.mxu0 0
  %50 = vmatpush1.bf16.msra.mxu0 0
  %51 = vmatprep.subr.bf16.mxu0 0
  %52 = vmatpush1.bf16.msra.mxu0 0
  %53 = vmatprep.subr.bf16.mxu0 0
  %54 = vmatpush1.bf16.msra.mxu0 0
  %55 = vmatprep.subr.bf16.mxu0 0
  %56 = vmatpush1.bf16.msra.mxu0 0
  %57 = vmatprep.subr.bf16.mxu0 0
  %58 = vmatpush1.bf16.msra.mxu0 %v41
  %59 = vmatprep.subr.bf16.mxu0 0
  %60 = vmatpush2.bf16.msra.mxu0 0
  %61 = vmatprep.subr.bf16.mxu0 0
  %62 = vmatpush2.bf16.msra.mxu0 0
  %63 = vmatprep.subr.bf16.mxu0 0
  %64 = vmatpush2.bf16.msra.mxu0 0
  %65 = vmatprep.subr.bf16.mxu0 0
  %66 = vmatpush2.bf16.msra.mxu0 0
  %67 = vmatprep.subr.bf16.mxu0 0
  %68 = vmatpush2.bf16.msra.mxu0 0
  %69 = vmatprep.subr.bf16.mxu0 0
  %70 = vmatpush2.bf16.msra.mxu0 0
  %71 = vmatprep.subr.bf16.mxu0 0
  %72 = vmatpush2.bf16.msra.mxu0 0
  %73 = vmatprep.subr.bf16.mxu0 0
  %74 = vmatpush2.bf16.msra.mxu0 0
  %75 = vmatprep.mubr.bf16.mxu0 0
  %76 = vmatmul.mubr.bf16.gmra.mxu0 %v37
  %v77 = vpop.f32.mrf.mxu0
  %v78 = vadd.f32 %v23, %v77
  %v79 = vpop.f32.mrf.mxu0
  %v80 = vpop.f32.mrf.mxu0
  %v81 = vadd.f32 %v28, %v80
  %v82 = vpop.f32.mrf.mxu0
  %83 = vdwg.mxu0
  %84 = vst [vmem:[%s3] sm:$0xff] %v78
  %85 = vst [vmem:[%s3 + $0x8] sm:$0xff] %v81
  // Predicated region
  $region14: #{_lambda_.7} parent=0 // pred_check
    _
  $region15: #{_lambda_.7} parent=0 // pred_check_branch
    %87 = sbr.rel (0) target = $region17
  $region16: #{_lambda_.7} parent=0 // pred_region
    _
  $region17: #{_lambda_.7} parent=0 // pred_fallthru
    _
  // Predicated region
  $region18: #{_lambda_.7} parent=0 // pred_check
    _
  $region19: #{_lambda_.7} parent=0 // pred_check_branch
    %89 = sbr.rel (0) target = $region21
  $region20: #{_lambda_.7} parent=0 // pred_region
    _
  $region21: #{_lambda_.7} parent=0 // pred_fallthru
    _

// kernel: _lambda_.8
$region0: #{_lambda_.8}
  #allocation0 [shape = 'u32[]', space=smem, size = 0x4, offset = 0x4, fixed_abs, tag = 'smem constant byte address 0x4 - core index']
  #allocation1 [shape = 'u32[144,128]{1,0:T(1,128)}', space=vmem, size = 0x12000, scoped, tag = 'internal scratch']
  %s0 = inlined_call_operand.vmem [shape: bf16[8,72], index: 0, kind: input, shape index: {}]
  %s1 = inlined_call_operand.vmem [shape: bf16[72,512], index: 1, kind: input, shape index: {}]
  %s2 = inlined_call_operand.vmem [shape: f32[8,1], index: 2, kind: input, shape index: {}]
  %s3 = inlined_call_operand.vmem [shape: f32[8,512], index: 3, kind: output, shape index: {}]
  %s4 = sld [smem:[#allocation0]]
  $region22: #{_lambda_.8} parent=0
    _
  %s6 = ssub.s32 1, %s4
  %s7 = scalar_select 0, %s6, %s4
  // Predicated region
  $region2: #{_lambda_.8} parent=0 // pred_check
    _
  $region3: #{_lambda_.8} parent=0 // pred_check_branch
    %9 = sbr.rel (0) target = $region5
  $region4: #{_lambda_.8} parent=0 // pred_region
    _
  $region5: #{_lambda_.8} parent=0 // pred_fallthru
    _
  // Predicated region
  $region6: #{_lambda_.8} parent=0 // pred_check
    _
  $region7: #{_lambda_.8} parent=0 // pred_check_branch
    %11 = sbr.rel (0) target = $region9
  $region8: #{_lambda_.8} parent=0 // pred_region
    _
  $region9: #{_lambda_.8} parent=0 // pred_fallthru
    _
  // Predicated region
  $region10: #{_lambda_.8} parent=0 // pred_check
    _
  $region11: #{_lambda_.8} parent=0 // pred_check_branch
    %13 = sbr.rel (0) target = $region13
  $region12: #{_lambda_.8} parent=0 // pred_region
    _
  $region13: #{_lambda_.8} parent=0 // pred_fallthru
    _
  %v15 = vld [vmem:[%s0] sm:$0xf]
  %v16 = vld [vmem:[%s1] sm:$0xff]
  %v17 = vld [vmem:[%s1 + $0x8] sm:$0xff]
  %v18 = vld [vmem:[%s1 + $0x10] sm:$0xff]
  %v19 = vld [vmem:[%s1 + $0x18] sm:$0xff]
  %v20 = vld [vmem:[%s1 + $0x20] sm:$0xff]
  %v21 = vld [vmem:[%s1 + $0x28] sm:$0xff]
  %v22 = vld [vmem:[%s1 + $0x30] sm:$0xff]
  %v23 = vld [vmem:[%s1 + $0x38] sm:$0xff]
  %v24 = vld [vmem:[%s1 + $0x40] sm:$0xff]
  %v25 = vld [vmem:[%s1 + $0x48] sm:$0xff]
  %v26 = vld [vmem:[%s1 + $0x50] sm:$0xff]
  %v27 = vld [vmem:[%s1 + $0x58] sm:$0xff]
  %v28 = vld [vmem:[%s1 + $0x60] sm:$0xff]
  %v29 = vld [vmem:[%s1 + $0x68] sm:$0xff]
  %v30 = vld [vmem:[%s1 + $0x70] sm:$0xff]
  %v31 = vld [vmem:[%s1 + $0x78] sm:$0xff]
  %v32 = vld [vmem:[%s1 + $0x80] sm:$0xff]
  %v33 = vld [vmem:[%s1 + $0x88] sm:$0xff]
  %v34 = vld [vmem:[%s2] sm:$0xff]
  %36 = vset.pattern.permute.xlu0 0
  %37 = vperm.xlu0 %36, %v34
  %v38 = vpop.permute.xlu0 %37
  %v58 = vunpack.c.l.b16 %v16
  %v59 = vunpack.c.h.b16 %v16
  %v60 = vunpack.c.l.b16 %v17
  %v61 = vunpack.c.h.b16 %v17
  %v62 = vunpack.c.l.b16 %v18
  %v63 = vunpack.c.h.b16 %v18
  %v64 = vunpack.c.l.b16 %v19
  %v65 = vunpack.c.h.b16 %v19
  %v66 = vunpack.c.l.b16 %v20
  %v67 = vunpack.c.h.b16 %v20
  %v68 = vunpack.c.l.b16 %v21
  %v69 = vunpack.c.h.b16 %v21
  %v70 = vunpack.c.l.b16 %v22
  %v71 = vunpack.c.h.b16 %v22
  %v72 = vunpack.c.l.b16 %v23
  %v73 = vunpack.c.h.b16 %v23
  %v74 = vunpack.c.l.b16 %v24
  %v75 = vunpack.c.h.b16 %v24
  %v76 = vunpack.c.l.b16 %v25
  %v77 = vunpack.c.h.b16 %v25
  %v78 = vunpack.c.l.b16 %v26
  %v79 = vunpack.c.h.b16 %v26
  %v80 = vunpack.c.l.b16 %v27
  %v81 = vunpack.c.h.b16 %v27
  %v82 = vunpack.c.l.b16 %v28
  %v83 = vunpack.c.h.b16 %v28
  %v84 = vunpack.c.l.b16 %v29
  %v85 = vunpack.c.h.b16 %v29
  %v86 = vunpack.c.l.b16 %v30
  %v87 = vunpack.c.h.b16 %v30
  %v88 = vunpack.c.l.b16 %v31
  %v89 = vunpack.c.h.b16 %v31
  %v90 = vunpack.c.l.b16 %v32
  %v91 = vunpack.c.h.b16 %v32
  %v92 = vunpack.c.l.b16 %v33
  %v93 = vunpack.c.h.b16 %v33
  %v94 = vpack.c.b16 %v62, %v58
  %v95 = vpack.c.b16 %v63, %v59
  %v96 = vpack.c.b16 %v64, %v60
  %v97 = vpack.c.b16 %v65, %v61
  %v98 = vpack.c.b16 %v70, %v66
  %v99 = vpack.c.b16 %v71, %v67
  %v100 = vpack.c.b16 %v72, %v68
  %v101 = vpack.c.b16 %v73, %v69
  %v102 = vpack.c.b16 %v78, %v74
  %v103 = vpack.c.b16 %v79, %v75
  %v104 = vpack.c.b16 %v80, %v76
  %v105 = vpack.c.b16 %v81, %v77
  %v106 = vpack.c.b16 %v86, %v82
  %v107 = vpack.c.b16 %v87, %v83
  %v108 = vpack.c.b16 %v88, %v84
  %v109 = vpack.c.b16 %v89, %v85
  %v110 = vpack.c.b16 %v90, %v90
  %v111 = vpack.c.b16 %v91, %v91
  %v112 = vpack.c.b16 %v92, %v92
  %v113 = vpack.c.b16 %v93, %v93
  %vm130 = vcmask 588800
  %v132 = vsel %vm130, %v15, 0
  %vm134 = vcmask 1043456
  %v136 = vsel %vm134, %v110, 0
  %v139 = vsel %vm134, %v111, 0
  %v142 = vsel %vm134, %v112, 0
  %v145 = vsel %vm134, %v113, 0
  %147 = vmatprep.subr.bf16.mxu0 0
  %148 = vmatpush1.bf16.msra.mxu0 0
  %149 = vmatprep.subr.bf16.mxu0 0
  %150 = vmatpush1.bf16.msra.mxu0 0
  %151 = vmatprep.subr.bf16.mxu0 0
  %152 = vmatpush1.bf16.msra.mxu0 0
  %153 = vmatprep.subr.bf16.mxu0 %v139
  %154 = vmatpush1.bf16.msra.mxu0 %v136
  %155 = vmatprep.subr.bf16.mxu0 %v107
  %156 = vmatpush1.bf16.msra.mxu0 %v106
  %157 = vmatprep.subr.bf16.mxu0 %v103
  %158 = vmatpush1.bf16.msra.mxu0 %v102
  %159 = vmatprep.subr.bf16.mxu0 %v99
  %160 = vmatpush1.bf16.msra.mxu0 %v98
  %161 = vmatprep.subr.bf16.mxu0 %v95
  %162 = vmatpush1.bf16.msra.mxu0 %v94
  %163 = vmatprep.subr.bf16.mxu0 0
  %164 = vmatpush2.bf16.msra.mxu0 0
  %165 = vmatprep.subr.bf16.mxu0 0
  %166 = vmatpush2.bf16.msra.mxu0 0
  %167 = vmatprep.subr.bf16.mxu0 0
  %168 = vmatpush2.bf16.msra.mxu0 0
  %169 = vmatprep.subr.bf16.mxu0 0
  %170 = vmatpush2.bf16.msra.mxu0 0
  %171 = vmatprep.subr.bf16.mxu0 0
  %172 = vmatpush2.bf16.msra.mxu0 0
  %173 = vmatprep.subr.bf16.mxu0 0
  %174 = vmatpush2.bf16.msra.mxu0 0
  %175 = vmatprep.subr.bf16.mxu0 0
  %176 = vmatpush2.bf16.msra.mxu0 0
  %177 = vmatprep.subr.bf16.mxu0 0
  %178 = vmatpush2.bf16.msra.mxu0 0
  %179 = vmatprep.mubr.bf16.mxu0 0
  %180 = vmatmul.mubr.bf16.gmra.mxu0 %v132
  %v181 = vpop.f32.mrf.mxu0
  %v182 = vadd.f32 %v38, %v181
  %v183 = vpop.f32.mrf.mxu0
  %v184 = vadd.f32 %v38, %v183
  %v185 = vpop.f32.mrf.mxu0
  %v186 = vpop.f32.mrf.mxu0
  %187 = vdwg.mxu0
  %188 = vmatprep.subr.bf16.mxu0 0
  %189 = vmatpush1.bf16.msra.mxu0 0
  %190 = vmatprep.subr.bf16.mxu0 0
  %191 = vmatpush1.bf16.msra.mxu0 0
  %192 = vmatprep.subr.bf16.mxu0 0
  %193 = vmatpush1.bf16.msra.mxu0 0
  %194 = vmatprep.subr.bf16.mxu0 %v145
  %195 = vmatpush1.bf16.msra.mxu0 %v142
  %196 = vmatprep.subr.bf16.mxu0 %v109
  %197 = vmatpush1.bf16.msra.mxu0 %v108
  %198 = vmatprep.subr.bf16.mxu0 %v105
  %199 = vmatpush1.bf16.msra.mxu0 %v104
  %200 = vmatprep.subr.bf16.mxu0 %v101
  %201 = vmatpush1.bf16.msra.mxu0 %v100
  %202 = vmatprep.subr.bf16.mxu0 %v97
  %203 = vmatpush1.bf16.msra.mxu0 %v96
  %204 = vmatprep.subr.bf16.mxu0 0
  %205 = vmatpush2.bf16.msra.mxu0 0
  %206 = vmatprep.subr.bf16.mxu0 0
  %207 = vmatpush2.bf16.msra.mxu0 0
  %208 = vmatprep.subr.bf16.mxu0 0
  %209 = vmatpush2.bf16.msra.mxu0 0
  %210 = vmatprep.subr.bf16.mxu0 0
  %211 = vmatpush2.bf16.msra.mxu0 0
  %212 = vmatprep.subr.bf16.mxu0 0
  %213 = vmatpush2.bf16.msra.mxu0 0
  %214 = vmatprep.subr.bf16.mxu0 0
  %215 = vmatpush2.bf16.msra.mxu0 0
  %216 = vmatprep.subr.bf16.mxu0 0
  %217 = vmatpush2.bf16.msra.mxu0 0
  %218 = vmatprep.subr.bf16.mxu0 0
  %219 = vmatpush2.bf16.msra.mxu0 0
  %220 = vmatprep.mubr.bf16.mxu0 0
  %221 = vmatmul.mubr.bf16.gmra.mxu0 %v132
  %v222 = vpop.f32.mrf.mxu0
  %v223 = vadd.f32 %v38, %v222
  %v224 = vpop.f32.mrf.mxu0
  %v225 = vadd.f32 %v38, %v224
  %v226 = vpop.f32.mrf.mxu0
  %v227 = vpop.f32.mrf.mxu0
  %228 = vdwg.mxu0
  %v229 = vmax.f32 %v182, 0.0
  %v230 = vmax.f32 %v184, 0.0
  %v231 = vmax.f32 %v223, 0.0
  %v232 = vmax.f32 %v225, 0.0
  %233 = vst [vmem:[%s3] sm:$0xff] %v229
  %234 = vst [vmem:[%s3 + $0x8] sm:$0xff] %v230
  %235 = vst [vmem:[%s3 + $0x10] sm:$0xff] %v231
  %236 = vst [vmem:[%s3 + $0x18] sm:$0xff] %v232
  // Predicated region
  $region14: #{_lambda_.8} parent=0 // pred_check
    _
  $region15: #{_lambda_.8} parent=0 // pred_check_branch
    %238 = sbr.rel (0) target = $region17
  $region16: #{_lambda_.8} parent=0 // pred_region
    _
  $region17: #{_lambda_.8} parent=0 // pred_fallthru
    _
  // Predicated region
  $region18: #{_lambda_.8} parent=0 // pred_check
    _
  $region19: #{_lambda_.8} parent=0 // pred_check_branch
    %240 = sbr.rel (0) target = $region21
  $region20: #{_lambda_.8} parent=0 // pred_region
    _
  $region21: #{_lambda_.8} parent=0 // pred_fallthru
    _

// kernel: tile.14
$region0: #{tile.14}
  #allocation0 [shape = 's32[1]{0}', space=sflag, size = 0x4, scoped, tag = 'scoped memory for tile.14']
  %s0 = inlined_call_operand.vmem [shape: f32[2], index: 0, kind: input, shape index: {}]
  %s1 = inlined_call_operand.vmem [shape: f32[4,2], index: 1, kind: output, shape index: {}]
  // Predicated region
  $region2: #{tile.14} parent=0 // pred_check
    _
  $region3: #{tile.14} parent=0 // pred_check_branch
    %3 = sbr.rel (0) target = $region5
  $region4: #{tile.14} parent=0 // pred_region
    _
  $region5: #{tile.14} parent=0 // pred_fallthru
    _
  %v4 = vld [vmem:[%s0] ss:$0 sm:$0xff]
  %5 = vst [vmem:[%s1] sm:$0xf] %v4

// kernel: _lambda_.9
$region0: #{_lambda_.9}
  #allocation0 [shape = 'u32[]', space=smem, size = 0x4, offset = 0x4, fixed_abs, tag = 'smem constant byte address 0x4 - core index']
  #allocation1 [shape = 'u32[144,128]{1,0:T(1,128)}', space=vmem, size = 0x12000, scoped, tag = 'internal scratch']
  %s0 = inlined_call_operand.vmem [shape: bf16[8,40], index: 0, kind: input, shape index: {}]
  %s1 = inlined_call_operand.vmem [shape: bf16[40,384], index: 1, kind: input, shape index: {}]
  %s2 = inlined_call_operand.vmem [shape: f32[8,1], index: 2, kind: input, shape index: {}]
  %s3 = inlined_call_operand.vmem [shape: f32[8,384], index: 3, kind: output, shape index: {}]
  %s4 = sld [smem:[#allocation0]]
  $region22: #{_lambda_.9} parent=0
    _
  %s6 = ssub.s32 1, %s4
  %s7 = scalar_select 0, %s6, %s4
  // Predicated region
  $region2: #{_lambda_.9} parent=0 // pred_check
    _
  $region3: #{_lambda_.9} parent=0 // pred_check_branch
    %9 = sbr.rel (0) target = $region5
  $region4: #{_lambda_.9} parent=0 // pred_region
    _
  $region5: #{_lambda_.9} parent=0 // pred_fallthru
    _
  // Predicated region
  $region6: #{_lambda_.9} parent=0 // pred_check
    _
  $region7: #{_lambda_.9} parent=0 // pred_check_branch
    %11 = sbr.rel (0) target = $region9
  $region8: #{_lambda_.9} parent=0 // pred_region
    _
  $region9: #{_lambda_.9} parent=0 // pred_fallthru
    _
  // Predicated region
  $region10: #{_lambda_.9} parent=0 // pred_check
    _
  $region11: #{_lambda_.9} parent=0 // pred_check_branch
    %13 = sbr.rel (0) target = $region13
  $region12: #{_lambda_.9} parent=0 // pred_region
    _
  $region13: #{_lambda_.9} parent=0 // pred_fallthru
    _
  %v15 = vld [vmem:[%s0] sm:$0xf]
  %v16 = vld [vmem:[%s1] sm:$0xff]
  %v17 = vld [vmem:[%s1 + $0x8] sm:$0xf]
  %v18 = vld [vmem:[%s1 + $0xc] sm:$0xff]
  %v19 = vld [vmem:[%s1 + $0x14] sm:$0xf]
  %v20 = vld [vmem:[%s1 + $0x18] sm:$0xff]
  %v21 = vld [vmem:[%s1 + $0x20] sm:$0xf]
  %v22 = vld [vmem:[%s1 + $0x24] sm:$0xff]
  %v23 = vld [vmem:[%s1 + $0x2c] sm:$0xf]
  %v24 = vld [vmem:[%s1 + $0x30] sm:$0xff]
  %v25 = vld [vmem:[%s1 + $0x38] sm:$0xf]
  %v26 = vld [vmem:[%s2] sm:$0xff]
  %28 = vset.pattern.permute.xlu0 0
  %29 = vperm.xlu0 %28, %v26
  %v30 = vpop.permute.xlu0 %29
  %v42 = vunpack.c.l.b16 %v16
  %v43 = vunpack.c.h.b16 %v16
  %v44 = vunpack.c.l.b16 %v17
  %v45 = vunpack.c.l.b16 %v18
  %v46 = vunpack.c.h.b16 %v18
  %v47 = vunpack.c.l.b16 %v19
  %v48 = vunpack.c.l.b16 %v20
  %v49 = vunpack.c.h.b16 %v20
  %v50 = vunpack.c.l.b16 %v21
  %v51 = vunpack.c.l.b16 %v22
  %v52 = vunpack.c.h.b16 %v22
  %v53 = vunpack.c.l.b16 %v23
  %v54 = vunpack.c.l.b16 %v24
  %v55 = vunpack.c.h.b16 %v24
  %v56 = vunpack.c.l.b16 %v25
  %v57 = vpack.c.b16 %v45, %v42
  %v58 = vpack.c.b16 %v46, %v43
  %v59 = vpack.c.b16 %v47, %v44
  %v60 = vpack.c.b16 %v51, %v48
  %v61 = vpack.c.b16 %v52, %v49
  %v62 = vpack.c.b16 %v53, %v50
  %v63 = vpack.c.b16 %v54, %v54
  %v64 = vpack.c.b16 %v55, %v55
  %v65 = vpack.c.b16 %v56, %v56
  %vm72 = vcmask 326656
  %v74 = vsel %vm72, %v15, 0
  %vm76 = vcmask 1043456
  %v78 = vsel %vm76, %v63, 0
  %v81 = vsel %vm76, %v64, 0
  %v84 = vsel %vm76, %v65, 0
  %86 = vmatprep.subr.bf16.mxu0 0
  %87 = vmatpush1.bf16.msra.mxu0 0
  %88 = vmatprep.subr.bf16.mxu0 0
  %89 = vmatpush1.bf16.msra.mxu0 0
  %90 = vmatprep.subr.bf16.mxu0 0
  %91 = vmatpush1.bf16.msra.mxu0 0
  %92 = vmatprep.subr.bf16.mxu0 0
  %93 = vmatpush1.bf16.msra.mxu0 0
  %94 = vmatprep.subr.bf16.mxu0 0
  %95 = vmatpush1.bf16.msra.mxu0 0
  %96 = vmatprep.subr.bf16.mxu0 %v81
  %97 = vmatpush1.bf16.msra.mxu0 %v78
  %98 = vmatprep.subr.bf16.mxu0 %v61
  %99 = vmatpush1.bf16.msra.mxu0 %v60
  %100 = vmatprep.subr.bf16.mxu0 %v58
  %101 = vmatpush1.bf16.msra.mxu0 %v57
  %102 = vmatprep.subr.bf16.mxu0 0
  %103 = vmatpush2.bf16.msra.mxu0 0
  %104 = vmatprep.subr.bf16.mxu0 0
  %105 = vmatpush2.bf16.msra.mxu0 0
  %106 = vmatprep.subr.bf16.mxu0 0
  %107 = vmatpush2.bf16.msra.mxu0 0
  %108 = vmatprep.subr.bf16.mxu0 0
  %109 = vmatpush2.bf16.msra.mxu0 0
  %110 = vmatprep.subr.bf16.mxu0 0
  %111 = vmatpush2.bf16.msra.mxu0 0
  %112 = vmatprep.subr.bf16.mxu0 0
  %113 = vmatpush2.bf16.msra.mxu0 0
  %114 = vmatprep.subr.bf16.mxu0 0
  %115 = vmatpush2.bf16.msra.mxu0 0
  %116 = vmatprep.subr.bf16.mxu0 0
  %117 = vmatpush2.bf16.msra.mxu0 0
  %118 = vmatprep.mubr.bf16.mxu0 0
  %119 = vmatmul.mubr.bf16.gmra.mxu0 %v74
  %v120 = vpop.f32.mrf.mxu0
  %v121 = vadd.f32 %v30, %v120
  %v122 = vpop.f32.mrf.mxu0
  %v123 = vadd.f32 %v30, %v122
  %v124 = vpop.f32.mrf.mxu0
  %v125 = vpop.f32.mrf.mxu0
  %126 = vdwg.mxu0
  %127 = vmatprep.subr.bf16.mxu0 0
  %128 = vmatpush1.bf16.msra.mxu0 0
  %129 = vmatprep.subr.bf16.mxu0 0
  %130 = vmatpush1.bf16.msra.mxu0 0
  %131 = vmatprep.subr.bf16.mxu0 0
  %132 = vmatpush1.bf16.msra.mxu0 0
  %133 = vmatprep.subr.bf16.mxu0 0
  %134 = vmatpush1.bf16.msra.mxu0 0
  %135 = vmatprep.subr.bf16.mxu0 0
  %136 = vmatpush1.bf16.msra.mxu0 0
  %137 = vmatprep.subr.bf16.mxu0 0
  %138 = vmatpush1.bf16.msra.mxu0 %v84
  %139 = vmatprep.subr.bf16.mxu0 0
  %140 = vmatpush1.bf16.msra.mxu0 %v62
  %141 = vmatprep.subr.bf16.mxu0 0
  %142 = vmatpush1.bf16.msra.mxu0 %v59
  %143 = vmatprep.subr.bf16.mxu0 0
  %144 = vmatpush2.bf16.msra.mxu0 0
  %145 = vmatprep.subr.bf16.mxu0 0
  %146 = vmatpush2.bf16.msra.mxu0 0
  %147 = vmatprep.subr.bf16.mxu0 0
  %148 = vmatpush2.bf16.msra.mxu0 0
  %149 = vmatprep.subr.bf16.mxu0 0
  %150 = vmatpush2.bf16.msra.mxu0 0
  %151 = vmatprep.subr.bf16.mxu0 0
  %152 = vmatpush2.bf16.msra.mxu0 0
  %153 = vmatprep.subr.bf16.mxu0 0
  %154 = vmatpush2.bf16.msra.mxu0 0
  %155 = vmatprep.subr.bf16.mxu0 0
  %156 = vmatpush2.bf16.msra.mxu0 0
  %157 = vmatprep.subr.bf16.mxu0 0
  %158 = vmatpush2.bf16.msra.mxu0 0
  %159 = vmatprep.mubr.bf16.mxu0 0
  %160 = vmatmul.mubr.bf16.gmra.mxu0 %v74
  %v161 = vpop.f32.mrf.mxu0
  %v162 = vadd.f32 %v30, %v161
  %v163 = vpop.f32.mrf.mxu0
  %v164 = vpop.f32.mrf.mxu0
  %v165 = vpop.f32.mrf.mxu0
  %166 = vdwg.mxu0
  %v167 = vmax.f32 %v121, 0.0
  %v168 = vmax.f32 %v123, 0.0
  %v169 = vmax.f32 %v162, 0.0
  %170 = vst [vmem:[%s3] sm:$0xff] %v167
  %171 = vst [vmem:[%s3 + $0x8] sm:$0xff] %v168
  %172 = vst [vmem:[%s3 + $0x10] sm:$0xff] %v169
  // Predicated region
  $region14: #{_lambda_.9} parent=0 // pred_check
    _
  $region15: #{_lambda_.9} parent=0 // pred_check_branch
    %174 = sbr.rel (0) target = $region17
  $region16: #{_lambda_.9} parent=0 // pred_region
    _
  $region17: #{_lambda_.9} parent=0 // pred_fallthru
    _
  // Predicated region
  $region18: #{_lambda_.9} parent=0 // pred_check
    _
  $region19: #{_lambda_.9} parent=0 // pred_check_branch
    %176 = sbr.rel (0) target = $region21
  $region20: #{_lambda_.9} parent=0 // pred_region
    _
  $region21: #{_lambda_.9} parent=0 // pred_fallthru
    _

// kernel: _lambda_.10
$region0: #{_lambda_.10}
  #allocation0 [shape = 'u32[]', space=smem, size = 0x4, offset = 0x4, fixed_abs, tag = 'smem constant byte address 0x4 - core index']
  #allocation1 [shape = 'u32[144,128]{1,0:T(1,128)}', space=vmem, size = 0x12000, scoped, tag = 'internal scratch']
  %s0 = inlined_call_operand.vmem [shape: bf16[8,8], index: 0, kind: input, shape index: {}]
  %s1 = inlined_call_operand.vmem [shape: bf16[8,384], index: 1, kind: input, shape index: {}]
  %s2 = inlined_call_operand.vmem [shape: f32[8,1], index: 2, kind: input, shape index: {}]
  %s3 = inlined_call_operand.vmem [shape: f32[8,384], index: 3, kind: output, shape index: {}]
  %s4 = sld [smem:[#allocation0]]
  $region22: #{_lambda_.10} parent=0
    _
  %s6 = ssub.s32 1, %s4
  %s7 = scalar_select 0, %s6, %s4
  // Predicated region
  $region2: #{_lambda_.10} parent=0 // pred_check
    _
  $region3: #{_lambda_.10} parent=0 // pred_check_branch
    %9 = sbr.rel (0) target = $region5
  $region4: #{_lambda_.10} parent=0 // pred_region
    _
  $region5: #{_lambda_.10} parent=0 // pred_fallthru
    _
  // Predicated region
  $region6: #{_lambda_.10} parent=0 // pred_check
    _
  $region7: #{_lambda_.10} parent=0 // pred_check_branch
    %11 = sbr.rel (0) target = $region9
  $region8: #{_lambda_.10} parent=0 // pred_region
    _
  $region9: #{_lambda_.10} parent=0 // pred_fallthru
    _
  // Predicated region
  $region10: #{_lambda_.10} parent=0 // pred_check
    _
  $region11: #{_lambda_.10} parent=0 // pred_check_branch
    %13 = sbr.rel (0) target = $region13
  $region12: #{_lambda_.10} parent=0 // pred_region
    _
  $region13: #{_lambda_.10} parent=0 // pred_fallthru
    _
  %v15 = vld [vmem:[%s0] sm:$0xf]
  %v16 = vld [vmem:[%s1] sm:$0xff]
  %v17 = vld [vmem:[%s1 + $0x8] sm:$0xf]
  %v18 = vld [vmem:[%s2] sm:$0xff]
  %20 = vset.pattern.permute.xlu0 0
  %21 = vperm.xlu0 %20, %v18
  %v22 = vpop.permute.xlu0 %21
  %v26 = vunpack.c.l.b16 %v16
  %v27 = vunpack.c.h.b16 %v16
  %v28 = vunpack.c.l.b16 %v17
  %v29 = vpack.c.b16 %v26, %v26
  %v30 = vpack.c.b16 %v27, %v27
  %v31 = vpack.c.b16 %v28, %v28
  %vm32 = vcmask 64512
  %v34 = vsel %vm32, %v15, 0
  %vm36 = vcmask 1043456
  %v38 = vsel %vm36, %v29, 0
  %v41 = vsel %vm36, %v30, 0
  %v44 = vsel %vm36, %v31, 0
  %46 = vmatprep.subr.bf16.mxu0 0
  %47 = vmatpush1.bf16.msra.mxu0 0
  %48 = vmatprep.subr.bf16.mxu0 0
  %49 = vmatpush1.bf16.msra.mxu0 0
  %50 = vmatprep.subr.bf16.mxu0 0
  %51 = vmatpush1.bf16.msra.mxu0 0
  %52 = vmatprep.subr.bf16.mxu0 0
  %53 = vmatpush1.bf16.msra.mxu0 0
  %54 = vmatprep.subr.bf16.mxu0 0
  %55 = vmatpush1.bf16.msra.mxu0 0
  %56 = vmatprep.subr.bf16.mxu0 0
  %57 = vmatpush1.bf16.msra.mxu0 0
  %58 = vmatprep.subr.bf16.mxu0 0
  %59 = vmatpush1.bf16.msra.mxu0 0
  %60 = vmatprep.subr.bf16.mxu0 %v41
  %61 = vmatpush1.bf16.msra.mxu0 %v38
  %62 = vmatprep.subr.bf16.mxu0 0
  %63 = vmatpush2.bf16.msra.mxu0 0
  %64 = vmatprep.subr.bf16.mxu0 0
  %65 = vmatpush2.bf16.msra.mxu0 0
  %66 = vmatprep.subr.bf16.mxu0 0
  %67 = vmatpush2.bf16.msra.mxu0 0
  %68 = vmatprep.subr.bf16.mxu0 0
  %69 = vmatpush2.bf16.msra.mxu0 0
  %70 = vmatprep.subr.bf16.mxu0 0
  %71 = vmatpush2.bf16.msra.mxu0 0
  %72 = vmatprep.subr.bf16.mxu0 0
  %73 = vmatpush2.bf16.msra.mxu0 0
  %74 = vmatprep.subr.bf16.mxu0 0
  %75 = vmatpush2.bf16.msra.mxu0 0
  %76 = vmatprep.subr.bf16.mxu0 0
  %77 = vmatpush2.bf16.msra.mxu0 0
  %78 = vmatprep.mubr.bf16.mxu0 0
  %79 = vmatmul.mubr.bf16.gmra.mxu0 %v34
  %v80 = vpop.f32.mrf.mxu0
  %v81 = vadd.f32 %v22, %v80
  %v82 = vpop.f32.mrf.mxu0
  %v83 = vadd.f32 %v22, %v82
  %v84 = vpop.f32.mrf.mxu0
  %v85 = vpop.f32.mrf.mxu0
  %86 = vdwg.mxu0
  %87 = vmatprep.subr.bf16.mxu0 0
  %88 = vmatpush1.bf16.msra.mxu0 0
  %89 = vmatprep.subr.bf16.mxu0 0
  %90 = vmatpush1.bf16.msra.mxu0 0
  %91 = vmatprep.subr.bf16.mxu0 0
  %92 = vmatpush1.bf16.msra.mxu0 0
  %93 = vmatprep.subr.bf16.mxu0 0
  %94 = vmatpush1.bf16.msra.mxu0 0
  %95 = vmatprep.subr.bf16.mxu0 0
  %96 = vmatpush1.bf16.msra.mxu0 0
  %97 = vmatprep.subr.bf16.mxu0 0
  %98 = vmatpush1.bf16.msra.mxu0 0
  %99 = vmatprep.subr.bf16.mxu0 0
  %100 = vmatpush1.bf16.msra.mxu0 0
  %101 = vmatprep.subr.bf16.mxu0 0
  %102 = vmatpush1.bf16.msra.mxu0 %v44
  %103 = vmatprep.subr.bf16.mxu0 0
  %104 = vmatpush2.bf16.msra.mxu0 0
  %105 = vmatprep.subr.bf16.mxu0 0
  %106 = vmatpush2.bf16.msra.mxu0 0
  %107 = vmatprep.subr.bf16.mxu0 0
  %108 = vmatpush2.bf16.msra.mxu0 0
  %109 = vmatprep.subr.bf16.mxu0 0
  %110 = vmatpush2.bf16.msra.mxu0 0
  %111 = vmatprep.subr.bf16.mxu0 0
  %112 = vmatpush2.bf16.msra.mxu0 0
  %113 = vmatprep.subr.bf16.mxu0 0
  %114 = vmatpush2.bf16.msra.mxu0 0
  %115 = vmatprep.subr.bf16.mxu0 0
  %116 = vmatpush2.bf16.msra.mxu0 0
  %117 = vmatprep.subr.bf16.mxu0 0
  %118 = vmatpush2.bf16.msra.mxu0 0
  %119 = vmatprep.mubr.bf16.mxu0 0
  %120 = vmatmul.mubr.bf16.gmra.mxu0 %v34
  %v121 = vpop.f32.mrf.mxu0
  %v122 = vadd.f32 %v22, %v121
  %v123 = vpop.f32.mrf.mxu0
  %v124 = vpop.f32.mrf.mxu0
  %v125 = vpop.f32.mrf.mxu0
  %126 = vdwg.mxu0
  %127 = vst [vmem:[%s3] sm:$0xff] %v81
  %128 = vst [vmem:[%s3 + $0x8] sm:$0xff] %v83
  %129 = vst [vmem:[%s3 + $0x10] sm:$0xff] %v122
  // Predicated region
  $region14: #{_lambda_.10} parent=0 // pred_check
    _
  $region15: #{_lambda_.10} parent=0 // pred_check_branch
    %131 = sbr.rel (0) target = $region17
  $region16: #{_lambda_.10} parent=0 // pred_region
    _
  $region17: #{_lambda_.10} parent=0 // pred_fallthru
    _
  // Predicated region
  $region18: #{_lambda_.10} parent=0 // pred_check
    _
  $region19: #{_lambda_.10} parent=0 // pred_check_branch
    %133 = sbr.rel (0) target = $region21
  $region20: #{_lambda_.10} parent=0 // pred_region
    _
  $region21: #{_lambda_.10} parent=0 // pred_fallthru
    _

// kernel: _lambda_.11
$region0: #{_lambda_.11}
  #allocation0 [shape = 'u32[]', space=smem, size = 0x4, offset = 0x4, fixed_abs, tag = 'smem constant byte address 0x4 - core index']
  #allocation1 [shape = 'u32[144,128]{1,0:T(1,128)}', space=vmem, size = 0x12000, scoped, tag = 'internal scratch']
  %s0 = inlined_call_operand.vmem [shape: bf16[8,40], index: 0, kind: input, shape index: {}]
  %s1 = inlined_call_operand.vmem [shape: bf16[40,1024], index: 1, kind: input, shape index: {}]
  %s2 = inlined_call_operand.vmem [shape: f32[8,1], index: 2, kind: input, shape index: {}]
  %s3 = inlined_call_operand.vmem [shape: f32[8,1024], index: 3, kind: output, shape index: {}]
  %s4 = sld [smem:[#allocation0]]
  $region22: #{_lambda_.11} parent=0
    _
  %s6 = ssub.s32 1, %s4
  %s7 = scalar_select 0, %s6, %s4
  // Predicated region
  $region2: #{_lambda_.11} parent=0 // pred_check
    _
  $region3: #{_lambda_.11} parent=0 // pred_check_branch
    %9 = sbr.rel (0) target = $region5
  $region4: #{_lambda_.11} parent=0 // pred_region
    _
  $region5: #{_lambda_.11} parent=0 // pred_fallthru
    _
  // Predicated region
  $region6: #{_lambda_.11} parent=0 // pred_check
    _
  $region7: #{_lambda_.11} parent=0 // pred_check_branch
    %11 = sbr.rel (0) target = $region9
  $region8: #{_lambda_.11} parent=0 // pred_region
    _
  $region9: #{_lambda_.11} parent=0 // pred_fallthru
    _
  // Predicated region
  $region10: #{_lambda_.11} parent=0 // pred_check
    _
  $region11: #{_lambda_.11} parent=0 // pred_check_branch
    %13 = sbr.rel (0) target = $region13
  $region12: #{_lambda_.11} parent=0 // pred_region
    _
  $region13: #{_lambda_.11} parent=0 // pred_fallthru
    _
  %v15 = vld [vmem:[%s0] sm:$0xf]
  %v16 = vld [vmem:[%s1] sm:$0xff]
  %v17 = vld [vmem:[%s1 + $0x8] sm:$0xff]
  %v18 = vld [vmem:[%s1 + $0x10] sm:$0xff]
  %v19 = vld [vmem:[%s1 + $0x18] sm:$0xff]
  %v20 = vld [vmem:[%s1 + $0x20] sm:$0xff]
  %v21 = vld [vmem:[%s1 + $0x28] sm:$0xff]
  %v22 = vld [vmem:[%s1 + $0x30] sm:$0xff]
  %v23 = vld [vmem:[%s1 + $0x38] sm:$0xff]
  %v24 = vld [vmem:[%s1 + $0x40] sm:$0xff]
  %v25 = vld [vmem:[%s1 + $0x48] sm:$0xff]
  %v26 = vld [vmem:[%s1 + $0x50] sm:$0xff]
  %v27 = vld [vmem:[%s1 + $0x58] sm:$0xff]
  %v28 = vld [vmem:[%s1 + $0x60] sm:$0xff]
  %v29 = vld [vmem:[%s1 + $0x68] sm:$0xff]
  %v30 = vld [vmem:[%s1 + $0x70] sm:$0xff]
  %v31 = vld [vmem:[%s1 + $0x78] sm:$0xff]
  %v32 = vld [vmem:[%s1 + $0x80] sm:$0xff]
  %v33 = vld [vmem:[%s1 + $0x88] sm:$0xff]
  %v34 = vld [vmem:[%s1 + $0x90] sm:$0xff]
  %v35 = vld [vmem:[%s1 + $0x98] sm:$0xff]
  %v36 = vld [vmem:[%s2] sm:$0xff]
  %38 = vset.pattern.permute.xlu0 0
  %39 = vperm.xlu0 %38, %v36
  %v40 = vpop.permute.xlu0 %39
  %v62 = vunpack.c.l.b16 %v16
  %v63 = vunpack.c.h.b16 %v16
  %v64 = vunpack.c.l.b16 %v17
  %v65 = vunpack.c.h.b16 %v17
  %v66 = vunpack.c.l.b16 %v18
  %v67 = vunpack.c.h.b16 %v18
  %v68 = vunpack.c.l.b16 %v19
  %v69 = vunpack.c.h.b16 %v19
  %v70 = vunpack.c.l.b16 %v20
  %v71 = vunpack.c.h.b16 %v20
  %v72 = vunpack.c.l.b16 %v21
  %v73 = vunpack.c.h.b16 %v21
  %v74 = vunpack.c.l.b16 %v22
  %v75 = vunpack.c.h.b16 %v22
  %v76 = vunpack.c.l.b16 %v23
  %v77 = vunpack.c.h.b16 %v23
  %v78 = vunpack.c.l.b16 %v24
  %v79 = vunpack.c.h.b16 %v24
  %v80 = vunpack.c.l.b16 %v25
  %v81 = vunpack.c.h.b16 %v25
  %v82 = vunpack.c.l.b16 %v26
  %v83 = vunpack.c.h.b16 %v26
  %v84 = vunpack.c.l.b16 %v27
  %v85 = vunpack.c.h.b16 %v27
  %v86 = vunpack.c.l.b16 %v28
  %v87 = vunpack.c.h.b16 %v28
  %v88 = vunpack.c.l.b16 %v29
  %v89 = vunpack.c.h.b16 %v29
  %v90 = vunpack.c.l.b16 %v30
  %v91 = vunpack.c.h.b16 %v30
  %v92 = vunpack.c.l.b16 %v31
  %v93 = vunpack.c.h.b16 %v31
  %v94 = vunpack.c.l.b16 %v32
  %v95 = vunpack.c.h.b16 %v32
  %v96 = vunpack.c.l.b16 %v33
  %v97 = vunpack.c.h.b16 %v33
  %v98 = vunpack.c.l.b16 %v34
  %v99 = vunpack.c.h.b16 %v34
  %v100 = vunpack.c.l.b16 %v35
  %v101 = vunpack.c.h.b16 %v35
  %v102 = vpack.c.b16 %v70, %v62
  %v103 = vpack.c.b16 %v71, %v63
  %v104 = vpack.c.b16 %v72, %v64
  %v105 = vpack.c.b16 %v73, %v65
  %v106 = vpack.c.b16 %v74, %v66
  %v107 = vpack.c.b16 %v75, %v67
  %v108 = vpack.c.b16 %v76, %v68
  %v109 = vpack.c.b16 %v77, %v69
  %v110 = vpack.c.b16 %v86, %v78
  %v111 = vpack.c.b16 %v87, %v79
  %v112 = vpack.c.b16 %v88, %v80
  %v113 = vpack.c.b16 %v89, %v81
  %v114 = vpack.c.b16 %v90, %v82
  %v115 = vpack.c.b16 %v91, %v83
  %v116 = vpack.c.b16 %v92, %v84
  %v117 = vpack.c.b16 %v93, %v85
  %v118 = vpack.c.b16 %v94, %v94
  %v119 = vpack.c.b16 %v95, %v95
  %v120 = vpack.c.b16 %v96, %v96
  %v121 = vpack.c.b16 %v97, %v97
  %v122 = vpack.c.b16 %v98, %v98
  %v123 = vpack.c.b16 %v99, %v99
  %v124 = vpack.c.b16 %v100, %v100
  %v125 = vpack.c.b16 %v101, %v101
  %vm142 = vcmask 326656
  %v144 = vsel %vm142, %v15, 0
  %vm146 = vcmask 1043456
  %v148 = vsel %vm146, %v118, 0
  %v151 = vsel %vm146, %v119, 0
  %v154 = vsel %vm146, %v120, 0
  %v157 = vsel %vm146, %v121, 0
  %v160 = vsel %vm146, %v122, 0
  %v163 = vsel %vm146, %v123, 0
  %v166 = vsel %vm146, %v124, 0
  %v169 = vsel %vm146, %v125, 0
  %171 = vmatprep.subr.bf16.mxu0 0
  %172 = vmatpush1.bf16.msra.mxu0 0
  %173 = vmatprep.subr.bf16.mxu0 0
  %174 = vmatpush1.bf16.msra.mxu0 0
  %175 = vmatprep.subr.bf16.mxu0 0
  %176 = vmatpush1.bf16.msra.mxu0 0
  %177 = vmatprep.subr.bf16.mxu0 0
  %178 = vmatpush1.bf16.msra.mxu0 0
  %179 = vmatprep.subr.bf16.mxu0 0
  %180 = vmatpush1.bf16.msra.mxu0 0
  %181 = vmatprep.subr.bf16.mxu0 %v151
  %182 = vmatpush1.bf16.msra.mxu0 %v148
  %183 = vmatprep.subr.bf16.mxu0 %v111
  %184 = vmatpush1.bf16.msra.mxu0 %v110
  %185 = vmatprep.subr.bf16.mxu0 %v103
  %186 = vmatpush1.bf16.msra.mxu0 %v102
  %187 = vmatprep.subr.bf16.mxu0 0
  %188 = vmatpush2.bf16.msra.mxu0 0
  %189 = vmatprep.subr.bf16.mxu0 0
  %190 = vmatpush2.bf16.msra.mxu0 0
  %191 = vmatprep.subr.bf16.mxu0 0
  %192 = vmatpush2.bf16.msra.mxu0 0
  %193 = vmatprep.subr.bf16.mxu0 0
  %194 = vmatpush2.bf16.msra.mxu0 0
  %195 = vmatprep.subr.bf16.mxu0 0
  %196 = vmatpush2.bf16.msra.mxu0 0
  %197 = vmatprep.subr.bf16.mxu0 0
  %198 = vmatpush2.bf16.msra.mxu0 0
  %199 = vmatprep.subr.bf16.mxu0 0
  %200 = vmatpush2.bf16.msra.mxu0 0
  %201 = vmatprep.subr.bf16.mxu0 0
  %202 = vmatpush2.bf16.msra.mxu0 0
  %203 = vmatprep.mubr.bf16.mxu0 0
  %204 = vmatmul.mubr.bf16.gmra.mxu0 %v144
  %v205 = vpop.f32.mrf.mxu0
  %v206 = vadd.f32 %v40, %v205
  %v207 = vpop.f32.mrf.mxu0
  %v208 = vadd.f32 %v40, %v207
  %v209 = vpop.f32.mrf.mxu0
  %v210 = vpop.f32.mrf.mxu0
  %211 = vdwg.mxu0
  %212 = vmatprep.subr.bf16.mxu0 0
  %213 = vmatpush1.bf16.msra.mxu0 0
  %214 = vmatprep.subr.bf16.mxu0 0
  %215 = vmatpush1.bf16.msra.mxu0 0
  %216 = vmatprep.subr.bf16.mxu0 0
  %217 = vmatpush1.bf16.msra.mxu0 0
  %218 = vmatprep.subr.bf16.mxu0 0
  %219 = vmatpush1.bf16.msra.mxu0 0
  %220 = vmatprep.subr.bf16.mxu0 0
  %221 = vmatpush1.bf16.msra.mxu0 0
  %222 = vmatprep.subr.bf16.mxu0 %v157
  %223 = vmatpush1.bf16.msra.mxu0 %v154
  %224 = vmatprep.subr.bf16.mxu0 %v113
  %225 = vmatpush1.bf16.msra.mxu0 %v112
  %226 = vmatprep.subr.bf16.mxu0 %v105
  %227 = vmatpush1.bf16.msra.mxu0 %v104
  %228 = vmatprep.subr.bf16.mxu0 0
  %229 = vmatpush2.bf16.msra.mxu0 0
  %230 = vmatprep.subr.bf16.mxu0 0
  %231 = vmatpush2.bf16.msra.mxu0 0
  %232 = vmatprep.subr.bf16.mxu0 0
  %233 = vmatpush2.bf16.msra.mxu0 0
  %234 = vmatprep.subr.bf16.mxu0 0
  %235 = vmatpush2.bf16.msra.mxu0 0
  %236 = vmatprep.subr.bf16.mxu0 0
  %237 = vmatpush2.bf16.msra.mxu0 0
  %238 = vmatprep.subr.bf16.mxu0 0
  %239 = vmatpush2.bf16.msra.mxu0 0
  %240 = vmatprep.subr.bf16.mxu0 0
  %241 = vmatpush2.bf16.msra.mxu0 0
  %242 = vmatprep.subr.bf16.mxu0 0
  %243 = vmatpush2.bf16.msra.mxu0 0
  %244 = vmatprep.mubr.bf16.mxu0 0
  %245 = vmatmul.mubr.bf16.gmra.mxu0 %v144
  %v246 = vpop.f32.mrf.mxu0
  %v247 = vadd.f32 %v40, %v246
  %v248 = vpop.f32.mrf.mxu0
  %v249 = vadd.f32 %v40, %v248
  %v250 = vpop.f32.mrf.mxu0
  %v251 = vpop.f32.mrf.mxu0
  %252 = vdwg.mxu0
  %253 = vmatprep.subr.bf16.mxu0 0
  %254 = vmatpush1.bf16.msra.mxu0 0
  %255 = vmatprep.subr.bf16.mxu0 0
  %256 = vmatpush1.bf16.msra.mxu0 0
  %257 = vmatprep.subr.bf16.mxu0 0
  %258 = vmatpush1.bf16.msra.mxu0 0
  %259 = vmatprep.subr.bf16.mxu0 0
  %260 = vmatpush1.bf16.msra.mxu0 0
  %261 = vmatprep.subr.bf16.mxu0 0
  %262 = vmatpush1.bf16.msra.mxu0 0
  %263 = vmatprep.subr.bf16.mxu0 %v163
  %264 = vmatpush1.bf16.msra.mxu0 %v160
  %265 = vmatprep.subr.bf16.mxu0 %v115
  %266 = vmatpush1.bf16.msra.mxu0 %v114
  %267 = vmatprep.subr.bf16.mxu0 %v107
  %268 = vmatpush1.bf16.msra.mxu0 %v106
  %269 = vmatprep.subr.bf16.mxu0 0
  %270 = vmatpush2.bf16.msra.mxu0 0
  %271 = vmatprep.subr.bf16.mxu0 0
  %272 = vmatpush2.bf16.msra.mxu0 0
  %273 = vmatprep.subr.bf16.mxu0 0
  %274 = vmatpush2.bf16.msra.mxu0 0
  %275 = vmatprep.subr.bf16.mxu0 0
  %276 = vmatpush2.bf16.msra.mxu0 0
  %277 = vmatprep.subr.bf16.mxu0 0
  %278 = vmatpush2.bf16.msra.mxu0 0
  %279 = vmatprep.subr.bf16.mxu0 0
  %280 = vmatpush2.bf16.msra.mxu0 0
  %281 = vmatprep.subr.bf16.mxu0 0
  %282 = vmatpush2.bf16.msra.mxu0 0
  %283 = vmatprep.subr.bf16.mxu0 0
  %284 = vmatpush2.bf16.msra.mxu0 0
  %285 = vmatprep.mubr.bf16.mxu0 0
  %286 = vmatmul.mubr.bf16.gmra.mxu0 %v144
  %v287 = vpop.f32.mrf.mxu0
  %v288 = vadd.f32 %v40, %v287
  %v289 = vpop.f32.mrf.mxu0
  %v290 = vadd.f32 %v40, %v289
  %v291 = vpop.f32.mrf.mxu0
  %v292 = vpop.f32.mrf.mxu0
  %293 = vdwg.mxu0
  %294 = vmatprep.subr.bf16.mxu0 0
  %295 = vmatpush1.bf16.msra.mxu0 0
  %296 = vmatprep.subr.bf16.mxu0 0
  %297 = vmatpush1.bf16.msra.mxu0 0
  %298 = vmatprep.subr.bf16.mxu0 0
  %299 = vmatpush1.bf16.msra.mxu0 0
  %300 = vmatprep.subr.bf16.mxu0 0
  %301 = vmatpush1.bf16.msra.mxu0 0
  %302 = vmatprep.subr.bf16.mxu0 0
  %303 = vmatpush1.bf16.msra.mxu0 0
  %304 = vmatprep.subr.bf16.mxu0 %v169
  %305 = vmatpush1.bf16.msra.mxu0 %v166
  %306 = vmatprep.subr.bf16.mxu0 %v117
  %307 = vmatpush1.bf16.msra.mxu0 %v116
  %308 = vmatprep.subr.bf16.mxu0 %v109
  %309 = vmatpush1.bf16.msra.mxu0 %v108
  %310 = vmatprep.subr.bf16.mxu0 0
  %311 = vmatpush2.bf16.msra.mxu0 0
  %312 = vmatprep.subr.bf16.mxu0 0
  %313 = vmatpush2.bf16.msra.mxu0 0
  %314 = vmatprep.subr.bf16.mxu0 0
  %315 = vmatpush2.bf16.msra.mxu0 0
  %316 = vmatprep.subr.bf16.mxu0 0
  %317 = vmatpush2.bf16.msra.mxu0 0
  %318 = vmatprep.subr.bf16.mxu0 0
  %319 = vmatpush2.bf16.msra.mxu0 0
  %320 = vmatprep.subr.bf16.mxu0 0
  %321 = vmatpush2.bf16.msra.mxu0 0
  %322 = vmatprep.subr.bf16.mxu0 0
  %323 = vmatpush2.bf16.msra.mxu0 0
  %324 = vmatprep.subr.bf16.mxu0 0
  %325 = vmatpush2.bf16.msra.mxu0 0
  %326 = vmatprep.mubr.bf16.mxu0 0
  %327 = vmatmul.mubr.bf16.gmra.mxu0 %v144
  %v328 = vpop.f32.mrf.mxu0
  %v329 = vadd.f32 %v40, %v328
  %v330 = vpop.f32.mrf.mxu0
  %v331 = vadd.f32 %v40, %v330
  %v332 = vpop.f32.mrf.mxu0
  %v333 = vpop.f32.mrf.mxu0
  %334 = vdwg.mxu0
  %v335 = vmax.f32 %v206, 0.0
  %v336 = vmax.f32 %v208, 0.0
  %v337 = vmax.f32 %v247, 0.0
  %v338 = vmax.f32 %v249, 0.0
  %v339 = vmax.f32 %v288, 0.0
  %v340 = vmax.f32 %v290, 0.0
  %v341 = vmax.f32 %v329, 0.0
  %v342 = vmax.f32 %v331, 0.0
  %343 = vst [vmem:[%s3] sm:$0xff] %v335
  %344 = vst [vmem:[%s3 + $0x8] sm:$0xff] %v336
  %345 = vst [vmem:[%s3 + $0x10] sm:$0xff] %v337
  %346 = vst [vmem:[%s3 + $0x18] sm:$0xff] %v338
  %347 = vst [vmem:[%s3 + $0x20] sm:$0xff] %v339
  %348 = vst [vmem:[%s3 + $0x28] sm:$0xff] %v340
  %349 = vst [vmem:[%s3 + $0x30] sm:$0xff] %v341
  %350 = vst [vmem:[%s3 + $0x38] sm:$0xff] %v342
  // Predicated region
  $region14: #{_lambda_.11} parent=0 // pred_check
    _
  $region15: #{_lambda_.11} parent=0 // pred_check_branch
    %352 = sbr.rel (0) target = $region17
  $region16: #{_lambda_.11} parent=0 // pred_region
    _
  $region17: #{_lambda_.11} parent=0 // pred_fallthru
    _
  // Predicated region
  $region18: #{_lambda_.11} parent=0 // pred_check
    _
  $region19: #{_lambda_.11} parent=0 // pred_check_branch
    %354 = sbr.rel (0) target = $region21
  $region20: #{_lambda_.11} parent=0 // pred_region
    _
  $region21: #{_lambda_.11} parent=0 // pred_fallthru
    _

// kernel: _lambda_.12
$region0: #{_lambda_.12}
  #allocation0 [shape = 'u32[]', space=smem, size = 0x4, offset = 0x4, fixed_abs, tag = 'smem constant byte address 0x4 - core index']
  #allocation1 [shape = 'u32[144,128]{1,0:T(1,128)}', space=vmem, size = 0x12000, scoped, tag = 'internal scratch']
  %s0 = inlined_call_operand.vmem [shape: bf16[8,24], index: 0, kind: input, shape index: {}]
  %s1 = inlined_call_operand.vmem [shape: bf16[24,896], index: 1, kind: input, shape index: {}]
  %s2 = inlined_call_operand.vmem [shape: f32[8,1], index: 2, kind: input, shape index: {}]
  %s3 = inlined_call_operand.vmem [shape: f32[8,896], index: 3, kind: output, shape index: {}]
  %s4 = sld [smem:[#allocation0]]
  $region22: #{_lambda_.12} parent=0
    _
  %s6 = ssub.s32 1, %s4
  %s7 = scalar_select 0, %s6, %s4
  // Predicated region
  $region2: #{_lambda_.12} parent=0 // pred_check
    _
  $region3: #{_lambda_.12} parent=0 // pred_check_branch
    %9 = sbr.rel (0) target = $region5
  $region4: #{_lambda_.12} parent=0 // pred_region
    _
  $region5: #{_lambda_.12} parent=0 // pred_fallthru
    _
  // Predicated region
  $region6: #{_lambda_.12} parent=0 // pred_check
    _
  $region7: #{_lambda_.12} parent=0 // pred_check_branch
    %11 = sbr.rel (0) target = $region9
  $region8: #{_lambda_.12} parent=0 // pred_region
    _
  $region9: #{_lambda_.12} parent=0 // pred_fallthru
    _
  // Predicated region
  $region10: #{_lambda_.12} parent=0 // pred_check
    _
  $region11: #{_lambda_.12} parent=0 // pred_check_branch
    %13 = sbr.rel (0) target = $region13
  $region12: #{_lambda_.12} parent=0 // pred_region
    _
  $region13: #{_lambda_.12} parent=0 // pred_fallthru
    _
  %v15 = vld [vmem:[%s0] sm:$0xf]
  %v16 = vld [vmem:[%s1] sm:$0xff]
  %v17 = vld [vmem:[%s1 + $0x8] sm:$0xff]
  %v18 = vld [vmem:[%s1 + $0x10] sm:$0xff]
  %v19 = vld [vmem:[%s1 + $0x18] sm:$0xf]
  %v20 = vld [vmem:[%s1 + $0x1c] sm:$0xff]
  %v21 = vld [vmem:[%s1 + $0x24] sm:$0xff]
  %v22 = vld [vmem:[%s1 + $0x2c] sm:$0xff]
  %v23 = vld [vmem:[%s1 + $0x34] sm:$0xf]
  %v24 = vld [vmem:[%s1 + $0x38] sm:$0xff]
  %v25 = vld [vmem:[%s1 + $0x40] sm:$0xff]
  %v26 = vld [vmem:[%s1 + $0x48] sm:$0xff]
  %v27 = vld [vmem:[%s1 + $0x50] sm:$0xf]
  %v28 = vld [vmem:[%s2] sm:$0xff]
  %30 = vset.pattern.permute.xlu0 0
  %31 = vperm.xlu0 %30, %v28
  %v32 = vpop.permute.xlu0 %31
  %v46 = vunpack.c.l.b16 %v16
  %v47 = vunpack.c.h.b16 %v16
  %v48 = vunpack.c.l.b16 %v17
  %v49 = vunpack.c.h.b16 %v17
  %v50 = vunpack.c.l.b16 %v18
  %v51 = vunpack.c.h.b16 %v18
  %v52 = vunpack.c.l.b16 %v19
  %v53 = vunpack.c.l.b16 %v20
  %v54 = vunpack.c.h.b16 %v20
  %v55 = vunpack.c.l.b16 %v21
  %v56 = vunpack.c.h.b16 %v21
  %v57 = vunpack.c.l.b16 %v22
  %v58 = vunpack.c.h.b16 %v22
  %v59 = vunpack.c.l.b16 %v23
  %v60 = vunpack.c.l.b16 %v24
  %v61 = vunpack.c.h.b16 %v24
  %v62 = vunpack.c.l.b16 %v25
  %v63 = vunpack.c.h.b16 %v25
  %v64 = vunpack.c.l.b16 %v26
  %v65 = vunpack.c.h.b16 %v26
  %v66 = vunpack.c.l.b16 %v27
  %v67 = vpack.c.b16 %v53, %v46
  %v68 = vpack.c.b16 %v54, %v47
  %v69 = vpack.c.b16 %v55, %v48
  %v70 = vpack.c.b16 %v56, %v49
  %v71 = vpack.c.b16 %v57, %v50
  %v72 = vpack.c.b16 %v58, %v51
  %v73 = vpack.c.b16 %v59, %v52
  %v74 = vpack.c.b16 %v60, %v60
  %v75 = vpack.c.b16 %v61, %v61
  %v76 = vpack.c.b16 %v62, %v62
  %v77 = vpack.c.b16 %v63, %v63
  %v78 = vpack.c.b16 %v64, %v64
  %v79 = vpack.c.b16 %v65, %v65
  %v80 = vpack.c.b16 %v66, %v66
  %vm88 = vcmask 195584
  %v90 = vsel %vm88, %v15, 0
  %vm92 = vcmask 1043456
  %v94 = vsel %vm92, %v74, 0
  %v97 = vsel %vm92, %v75, 0
  %v100 = vsel %vm92, %v76, 0
  %v103 = vsel %vm92, %v77, 0
  %v106 = vsel %vm92, %v78, 0
  %v109 = vsel %vm92, %v79, 0
  %v112 = vsel %vm92, %v80, 0
  %114 = vmatprep.subr.bf16.mxu0 0
  %115 = vmatpush1.bf16.msra.mxu0 0
  %116 = vmatprep.subr.bf16.mxu0 0
  %117 = vmatpush1.bf16.msra.mxu0 0
  %118 = vmatprep.subr.bf16.mxu0 0
  %119 = vmatpush1.bf16.msra.mxu0 0
  %120 = vmatprep.subr.bf16.mxu0 0
  %121 = vmatpush1.bf16.msra.mxu0 0
  %122 = vmatprep.subr.bf16.mxu0 0
  %123 = vmatpush1.bf16.msra.mxu0 0
  %124 = vmatprep.subr.bf16.mxu0 0
  %125 = vmatpush1.bf16.msra.mxu0 0
  %126 = vmatprep.subr.bf16.mxu0 %v97
  %127 = vmatpush1.bf16.msra.mxu0 %v94
  %128 = vmatprep.subr.bf16.mxu0 %v68
  %129 = vmatpush1.bf16.msra.mxu0 %v67
  %130 = vmatprep.subr.bf16.mxu0 0
  %131 = vmatpush2.bf16.msra.mxu0 0
  %132 = vmatprep.subr.bf16.mxu0 0
  %133 = vmatpush2.bf16.msra.mxu0 0
  %134 = vmatprep.subr.bf16.mxu0 0
  %135 = vmatpush2.bf16.msra.mxu0 0
  %136 = vmatprep.subr.bf16.mxu0 0
  %137 = vmatpush2.bf16.msra.mxu0 0
  %138 = vmatprep.subr.bf16.mxu0 0
  %139 = vmatpush2.bf16.msra.mxu0 0
  %140 = vmatprep.subr.bf16.mxu0 0
  %141 = vmatpush2.bf16.msra.mxu0 0
  %142 = vmatprep.subr.bf16.mxu0 0
  %143 = vmatpush2.bf16.msra.mxu0 0
  %144 = vmatprep.subr.bf16.mxu0 0
  %145 = vmatpush2.bf16.msra.mxu0 0
  %146 = vmatprep.mubr.bf16.mxu0 0
  %147 = vmatmul.mubr.bf16.gmra.mxu0 %v90
  %v148 = vpop.f32.mrf.mxu0
  %v149 = vadd.f32 %v32, %v148
  %v150 = vpop.f32.mrf.mxu0
  %v151 = vadd.f32 %v32, %v150
  %v152 = vpop.f32.mrf.mxu0
  %v153 = vpop.f32.mrf.mxu0
  %154 = vdwg.mxu0
  %155 = vmatprep.subr.bf16.mxu0 0
  %156 = vmatpush1.bf16.msra.mxu0 0
  %157 = vmatprep.subr.bf16.mxu0 0
  %158 = vmatpush1.bf16.msra.mxu0 0
  %159 = vmatprep.subr.bf16.mxu0 0
  %160 = vmatpush1.bf16.msra.mxu0 0
  %161 = vmatprep.subr.bf16.mxu0 0
  %162 = vmatpush1.bf16.msra.mxu0 0
  %163 = vmatprep.subr.bf16.mxu0 0
  %164 = vmatpush1.bf16.msra.mxu0 0
  %165 = vmatprep.subr.bf16.mxu0 0
  %166 = vmatpush1.bf16.msra.mxu0 0
  %167 = vmatprep.subr.bf16.mxu0 %v103
  %168 = vmatpush1.bf16.msra.mxu0 %v100
  %169 = vmatprep.subr.bf16.mxu0 %v70
  %170 = vmatpush1.bf16.msra.mxu0 %v69
  %171 = vmatprep.subr.bf16.mxu0 0
  %172 = vmatpush2.bf16.msra.mxu0 0
  %173 = vmatprep.subr.bf16.mxu0 0
  %174 = vmatpush2.bf16.msra.mxu0 0
  %175 = vmatprep.subr.bf16.mxu0 0
  %176 = vmatpush2.bf16.msra.mxu0 0
  %177 = vmatprep.subr.bf16.mxu0 0
  %178 = vmatpush2.bf16.msra.mxu0 0
  %179 = vmatprep.subr.bf16.mxu0 0
  %180 = vmatpush2.bf16.msra.mxu0 0
  %181 = vmatprep.subr.bf16.mxu0 0
  %182 = vmatpush2.bf16.msra.mxu0 0
  %183 = vmatprep.subr.bf16.mxu0 0
  %184 = vmatpush2.bf16.msra.mxu0 0
  %185 = vmatprep.subr.bf16.mxu0 0
  %186 = vmatpush2.bf16.msra.mxu0 0
  %187 = vmatprep.mubr.bf16.mxu0 0
  %188 = vmatmul.mubr.bf16.gmra.mxu0 %v90
  %v189 = vpop.f32.mrf.mxu0
  %v190 = vadd.f32 %v32, %v189
  %v191 = vpop.f32.mrf.mxu0
  %v192 = vadd.f32 %v32, %v191
  %v193 = vpop.f32.mrf.mxu0
  %v194 = vpop.f32.mrf.mxu0
  %195 = vdwg.mxu0
  %196 = vmatprep.subr.bf16.mxu0 0
  %197 = vmatpush1.bf16.msra.mxu0 0
  %198 = vmatprep.subr.bf16.mxu0 0
  %199 = vmatpush1.bf16.msra.mxu0 0
  %200 = vmatprep.subr.bf16.mxu0 0
  %201 = vmatpush1.bf16.msra.mxu0 0
  %202 = vmatprep.subr.bf16.mxu0 0
  %203 = vmatpush1.bf16.msra.mxu0 0
  %204 = vmatprep.subr.bf16.mxu0 0
  %205 = vmatpush1.bf16.msra.mxu0 0
  %206 = vmatprep.subr.bf16.mxu0 0
  %207 = vmatpush1.bf16.msra.mxu0 0
  %208 = vmatprep.subr.bf16.mxu0 %v109
  %209 = vmatpush1.bf16.msra.mxu0 %v106
  %210 = vmatprep.subr.bf16.mxu0 %v72
  %211 = vmatpush1.bf16.msra.mxu0 %v71
  %212 = vmatprep.subr.bf16.mxu0 0
  %213 = vmatpush2.bf16.msra.mxu0 0
  %214 = vmatprep.subr.bf16.mxu0 0
  %215 = vmatpush2.bf16.msra.mxu0 0
  %216 = vmatprep.subr.bf16.mxu0 0
  %217 = vmatpush2.bf16.msra.mxu0 0
  %218 = vmatprep.subr.bf16.mxu0 0
  %219 = vmatpush2.bf16.msra.mxu0 0
  %220 = vmatprep.subr.bf16.mxu0 0
  %221 = vmatpush2.bf16.msra.mxu0 0
  %222 = vmatprep.subr.bf16.mxu0 0
  %223 = vmatpush2.bf16.msra.mxu0 0
  %224 = vmatprep.subr.bf16.mxu0 0
  %225 = vmatpush2.bf16.msra.mxu0 0
  %226 = vmatprep.subr.bf16.mxu0 0
  %227 = vmatpush2.bf16.msra.mxu0 0
  %228 = vmatprep.mubr.bf16.mxu0 0
  %229 = vmatmul.mubr.bf16.gmra.mxu0 %v90
  %v230 = vpop.f32.mrf.mxu0
  %v231 = vadd.f32 %v32, %v230
  %v232 = vpop.f32.mrf.mxu0
  %v233 = vadd.f32 %v32, %v232
  %v234 = vpop.f32.mrf.mxu0
  %v235 = vpop.f32.mrf.mxu0
  %236 = vdwg.mxu0
  %237 = vmatprep.subr.bf16.mxu0 0
  %238 = vmatpush1.bf16.msra.mxu0 0
  %239 = vmatprep.subr.bf16.mxu0 0
  %240 = vmatpush1.bf16.msra.mxu0 0
  %241 = vmatprep.subr.bf16.mxu0 0
  %242 = vmatpush1.bf16.msra.mxu0 0
  %243 = vmatprep.subr.bf16.mxu0 0
  %244 = vmatpush1.bf16.msra.mxu0 0
  %245 = vmatprep.subr.bf16.mxu0 0
  %246 = vmatpush1.bf16.msra.mxu0 0
  %247 = vmatprep.subr.bf16.mxu0 0
  %248 = vmatpush1.bf16.msra.mxu0 0
  %249 = vmatprep.subr.bf16.mxu0 0
  %250 = vmatpush1.bf16.msra.mxu0 %v112
  %251 = vmatprep.subr.bf16.mxu0 0
  %252 = vmatpush1.bf16.msra.mxu0 %v73
  %253 = vmatprep.subr.bf16.mxu0 0
  %254 = vmatpush2.bf16.msra.mxu0 0
  %255 = vmatprep.subr.bf16.mxu0 0
  %256 = vmatpush2.bf16.msra.mxu0 0
  %257 = vmatprep.subr.bf16.mxu0 0
  %258 = vmatpush2.bf16.msra.mxu0 0
  %259 = vmatprep.subr.bf16.mxu0 0
  %260 = vmatpush2.bf16.msra.mxu0 0
  %261 = vmatprep.subr.bf16.mxu0 0
  %262 = vmatpush2.bf16.msra.mxu0 0
  %263 = vmatprep.subr.bf16.mxu0 0
  %264 = vmatpush2.bf16.msra.mxu0 0
  %265 = vmatprep.subr.bf16.mxu0 0
  %266 = vmatpush2.bf16.msra.mxu0 0
  %267 = vmatprep.subr.bf16.mxu0 0
  %268 = vmatpush2.bf16.msra.mxu0 0
  %269 = vmatprep.mubr.bf16.mxu0 0
  %270 = vmatmul.mubr.bf16.gmra.mxu0 %v90
  %v271 = vpop.f32.mrf.mxu0
  %v272 = vadd.f32 %v32, %v271
  %v273 = vpop.f32.mrf.mxu0
  %v274 = vpop.f32.mrf.mxu0
  %v275 = vpop.f32.mrf.mxu0
  %276 = vdwg.mxu0
  %v277 = vmax.f32 %v149, 0.0
  %v278 = vmax.f32 %v151, 0.0
  %v279 = vmax.f32 %v190, 0.0
  %v280 = vmax.f32 %v192, 0.0
  %v281 = vmax.f32 %v231, 0.0
  %v282 = vmax.f32 %v233, 0.0
  %v283 = vmax.f32 %v272, 0.0
  %284 = vst [vmem:[%s3] sm:$0xff] %v277
  %285 = vst [vmem:[%s3 + $0x8] sm:$0xff] %v278
  %286 = vst [vmem:[%s3 + $0x10] sm:$0xff] %v279
  %287 = vst [vmem:[%s3 + $0x18] sm:$0xff] %v280
  %288 = vst [vmem:[%s3 + $0x20] sm:$0xff] %v281
  %289 = vst [vmem:[%s3 + $0x28] sm:$0xff] %v282
  %290 = vst [vmem:[%s3 + $0x30] sm:$0xff] %v283
  // Predicated region
  $region14: #{_lambda_.12} parent=0 // pred_check
    _
  $region15: #{_lambda_.12} parent=0 // pred_check_branch
    %292 = sbr.rel (0) target = $region17
  $region16: #{_lambda_.12} parent=0 // pred_region
    _
  $region17: #{_lambda_.12} parent=0 // pred_fallthru
    _
  // Predicated region
  $region18: #{_lambda_.12} parent=0 // pred_check
    _
  $region19: #{_lambda_.12} parent=0 // pred_check_branch
    %294 = sbr.rel (0) target = $region21
  $region20: #{_lambda_.12} parent=0 // pred_region
    _
  $region21: #{_lambda_.12} parent=0 // pred_fallthru
    _

// kernel: _lambda_.13
$region0: #{_lambda_.13}
  #allocation0 [shape = 'u32[]', space=smem, size = 0x4, offset = 0x4, fixed_abs, tag = 'smem constant byte address 0x4 - core index']
  #allocation1 [shape = 'u32[144,128]{1,0:T(1,128)}', space=vmem, size = 0x12000, scoped, tag = 'internal scratch']
  %s0 = inlined_call_operand.vmem [shape: bf16[8,8], index: 0, kind: input, shape index: {}]
  %s1 = inlined_call_operand.vmem [shape: bf16[8,896], index: 1, kind: input, shape index: {}]
  %s2 = inlined_call_operand.vmem [shape: f32[8,1], index: 2, kind: input, shape index: {}]
  %s3 = inlined_call_operand.vmem [shape: f32[8,896], index: 3, kind: output, shape index: {}]
  %s4 = sld [smem:[#allocation0]]
  $region22: #{_lambda_.13} parent=0
    _
  %s6 = ssub.s32 1, %s4
  %s7 = scalar_select 0, %s6, %s4
  // Predicated region
  $region2: #{_lambda_.13} parent=0 // pred_check
    _
  $region3: #{_lambda_.13} parent=0 // pred_check_branch
    %9 = sbr.rel (0) target = $region5
  $region4: #{_lambda_.13} parent=0 // pred_region
    _
  $region5: #{_lambda_.13} parent=0 // pred_fallthru
    _
  // Predicated region
  $region6: #{_lambda_.13} parent=0 // pred_check
    _
  $region7: #{_lambda_.13} parent=0 // pred_check_branch
    %11 = sbr.rel (0) target = $region9
  $region8: #{_lambda_.13} parent=0 // pred_region
    _
  $region9: #{_lambda_.13} parent=0 // pred_fallthru
    _
  // Predicated region
  $region10: #{_lambda_.13} parent=0 // pred_check
    _
  $region11: #{_lambda_.13} parent=0 // pred_check_branch
    %13 = sbr.rel (0) target = $region13
  $region12: #{_lambda_.13} parent=0 // pred_region
    _
  $region13: #{_lambda_.13} parent=0 // pred_fallthru
    _
  %v15 = vld [vmem:[%s0] sm:$0xf]
  %v16 = vld [vmem:[%s1] sm:$0xff]
  %v17 = vld [vmem:[%s1 + $0x8] sm:$0xff]
  %v18 = vld [vmem:[%s1 + $0x10] sm:$0xff]
  %v19 = vld [vmem:[%s1 + $0x18] sm:$0xf]
  %v20 = vld [vmem:[%s2] sm:$0xff]
  %22 = vset.pattern.permute.xlu0 0
  %23 = vperm.xlu0 %22, %v20
  %v24 = vpop.permute.xlu0 %23
  %v30 = vunpack.c.l.b16 %v16
  %v31 = vunpack.c.h.b16 %v16
  %v32 = vunpack.c.l.b16 %v17
  %v33 = vunpack.c.h.b16 %v17
  %v34 = vunpack.c.l.b16 %v18
  %v35 = vunpack.c.h.b16 %v18
  %v36 = vunpack.c.l.b16 %v19
  %v37 = vpack.c.b16 %v30, %v30
  %v38 = vpack.c.b16 %v31, %v31
  %v39 = vpack.c.b16 %v32, %v32
  %v40 = vpack.c.b16 %v33, %v33
  %v41 = vpack.c.b16 %v34, %v34
  %v42 = vpack.c.b16 %v35, %v35
  %v43 = vpack.c.b16 %v36, %v36
  %vm44 = vcmask 64512
  %v46 = vsel %vm44, %v15, 0
  %vm48 = vcmask 1043456
  %v50 = vsel %vm48, %v37, 0
  %v53 = vsel %vm48, %v38, 0
  %v56 = vsel %vm48, %v39, 0
  %v59 = vsel %vm48, %v40, 0
  %v62 = vsel %vm48, %v41, 0
  %v65 = vsel %vm48, %v42, 0
  %v68 = vsel %vm48, %v43, 0
  %70 = vmatprep.subr.bf16.mxu0 0
  %71 = vmatpush1.bf16.msra.mxu0 0
  %72 = vmatprep.subr.bf16.mxu0 0
  %73 = vmatpush1.bf16.msra.mxu0 0
  %74 = vmatprep.subr.bf16.mxu0 0
  %75 = vmatpush1.bf16.msra.mxu0 0
  %76 = vmatprep.subr.bf16.mxu0 0
  %77 = vmatpush1.bf16.msra.mxu0 0
  %78 = vmatprep.subr.bf16.mxu0 0
  %79 = vmatpush1.bf16.msra.mxu0 0
  %80 = vmatprep.subr.bf16.mxu0 0
  %81 = vmatpush1.bf16.msra.mxu0 0
  %82 = vmatprep.subr.bf16.mxu0 0
  %83 = vmatpush1.bf16.msra.mxu0 0
  %84 = vmatprep.subr.bf16.mxu0 %v53
  %85 = vmatpush1.bf16.msra.mxu0 %v50
  %86 = vmatprep.subr.bf16.mxu0 0
  %87 = vmatpush2.bf16.msra.mxu0 0
  %88 = vmatprep.subr.bf16.mxu0 0
  %89 = vmatpush2.bf16.msra.mxu0 0
  %90 = vmatprep.subr.bf16.mxu0 0
  %91 = vmatpush2.bf16.msra.mxu0 0
  %92 = vmatprep.subr.bf16.mxu0 0
  %93 = vmatpush2.bf16.msra.mxu0 0
  %94 = vmatprep.subr.bf16.mxu0 0
  %95 = vmatpush2.bf16.msra.mxu0 0
  %96 = vmatprep.subr.bf16.mxu0 0
  %97 = vmatpush2.bf16.msra.mxu0 0
  %98 = vmatprep.subr.bf16.mxu0 0
  %99 = vmatpush2.bf16.msra.mxu0 0
  %100 = vmatprep.subr.bf16.mxu0 0
  %101 = vmatpush2.bf16.msra.mxu0 0
  %102 = vmatprep.mubr.bf16.mxu0 0
  %103 = vmatmul.mubr.bf16.gmra.mxu0 %v46
  %v104 = vpop.f32.mrf.mxu0
  %v105 = vadd.f32 %v24, %v104
  %v106 = vpop.f32.mrf.mxu0
  %v107 = vadd.f32 %v24, %v106
  %v108 = vpop.f32.mrf.mxu0
  %v109 = vpop.f32.mrf.mxu0
  %110 = vdwg.mxu0
  %111 = vmatprep.subr.bf16.mxu0 0
  %112 = vmatpush1.bf16.msra.mxu0 0
  %113 = vmatprep.subr.bf16.mxu0 0
  %114 = vmatpush1.bf16.msra.mxu0 0
  %115 = vmatprep.subr.bf16.mxu0 0
  %116 = vmatpush1.bf16.msra.mxu0 0
  %117 = vmatprep.subr.bf16.mxu0 0
  %118 = vmatpush1.bf16.msra.mxu0 0
  %119 = vmatprep.subr.bf16.mxu0 0
  %120 = vmatpush1.bf16.msra.mxu0 0
  %121 = vmatprep.subr.bf16.mxu0 0
  %122 = vmatpush1.bf16.msra.mxu0 0
  %123 = vmatprep.subr.bf16.mxu0 0
  %124 = vmatpush1.bf16.msra.mxu0 0
  %125 = vmatprep.subr.bf16.mxu0 %v59
  %126 = vmatpush1.bf16.msra.mxu0 %v56
  %127 = vmatprep.subr.bf16.mxu0 0
  %128 = vmatpush2.bf16.msra.mxu0 0
  %129 = vmatprep.subr.bf16.mxu0 0
  %130 = vmatpush2.bf16.msra.mxu0 0
  %131 = vmatprep.subr.bf16.mxu0 0
  %132 = vmatpush2.bf16.msra.mxu0 0
  %133 = vmatprep.subr.bf16.mxu0 0
  %134 = vmatpush2.bf16.msra.mxu0 0
  %135 = vmatprep.subr.bf16.mxu0 0
  %136 = vmatpush2.bf16.msra.mxu0 0
  %137 = vmatprep.subr.bf16.mxu0 0
  %138 = vmatpush2.bf16.msra.mxu0 0
  %139 = vmatprep.subr.bf16.mxu0 0
  %140 = vmatpush2.bf16.msra.mxu0 0
  %141 = vmatprep.subr.bf16.mxu0 0
  %142 = vmatpush2.bf16.msra.mxu0 0
  %143 = vmatprep.mubr.bf16.mxu0 0
  %144 = vmatmul.mubr.bf16.gmra.mxu0 %v46
  %v145 = vpop.f32.mrf.mxu0
  %v146 = vadd.f32 %v24, %v145
  %v147 = vpop.f32.mrf.mxu0
  %v148 = vadd.f32 %v24, %v147
  %v149 = vpop.f32.mrf.mxu0
  %v150 = vpop.f32.mrf.mxu0
  %151 = vdwg.mxu0
  %152 = vmatprep.subr.bf16.mxu0 0
  %153 = vmatpush1.bf16.msra.mxu0 0
  %154 = vmatprep.subr.bf16.mxu0 0
  %155 = vmatpush1.bf16.msra.mxu0 0
  %156 = vmatprep.subr.bf16.mxu0 0
  %157 = vmatpush1.bf16.msra.mxu0 0
  %158 = vmatprep.subr.bf16.mxu0 0
  %159 = vmatpush1.bf16.msra.mxu0 0
  %160 = vmatprep.subr.bf16.mxu0 0
  %161 = vmatpush1.bf16.msra.mxu0 0
  %162 = vmatprep.subr.bf16.mxu0 0
  %163 = vmatpush1.bf16.msra.mxu0 0
  %164 = vmatprep.subr.bf16.mxu0 0
  %165 = vmatpush1.bf16.msra.mxu0 0
  %166 = vmatprep.subr.bf16.mxu0 %v65
  %167 = vmatpush1.bf16.msra.mxu0 %v62
  %168 = vmatprep.subr.bf16.mxu0 0
  %169 = vmatpush2.bf16.msra.mxu0 0
  %170 = vmatprep.subr.bf16.mxu0 0
  %171 = vmatpush2.bf16.msra.mxu0 0
  %172 = vmatprep.subr.bf16.mxu0 0
  %173 = vmatpush2.bf16.msra.mxu0 0
  %174 = vmatprep.subr.bf16.mxu0 0
  %175 = vmatpush2.bf16.msra.mxu0 0
  %176 = vmatprep.subr.bf16.mxu0 0
  %177 = vmatpush2.bf16.msra.mxu0 0
  %178 = vmatprep.subr.bf16.mxu0 0
  %179 = vmatpush2.bf16.msra.mxu0 0
  %180 = vmatprep.subr.bf16.mxu0 0
  %181 = vmatpush2.bf16.msra.mxu0 0
  %182 = vmatprep.subr.bf16.mxu0 0
  %183 = vmatpush2.bf16.msra.mxu0 0
  %184 = vmatprep.mubr.bf16.mxu0 0
  %185 = vmatmul.mubr.bf16.gmra.mxu0 %v46
  %v186 = vpop.f32.mrf.mxu0
  %v187 = vadd.f32 %v24, %v186
  %v188 = vpop.f32.mrf.mxu0
  %v189 = vadd.f32 %v24, %v188
  %v190 = vpop.f32.mrf.mxu0
  %v191 = vpop.f32.mrf.mxu0
  %192 = vdwg.mxu0
  %193 = vmatprep.subr.bf16.mxu0 0
  %194 = vmatpush1.bf16.msra.mxu0 0
  %195 = vmatprep.subr.bf16.mxu0 0
  %196 = vmatpush1.bf16.msra.mxu0 0
  %197 = vmatprep.subr.bf16.mxu0 0
  %198 = vmatpush1.bf16.msra.mxu0 0
  %199 = vmatprep.subr.bf16.mxu0 0
  %200 = vmatpush1.bf16.msra.mxu0 0
  %201 = vmatprep.subr.bf16.mxu0 0
  %202 = vmatpush1.bf16.msra.mxu0 0
  %203 = vmatprep.subr.bf16.mxu0 0
  %204 = vmatpush1.bf16.msra.mxu0 0
  %205 = vmatprep.subr.bf16.mxu0 0
  %206 = vmatpush1.bf16.msra.mxu0 0
  %207 = vmatprep.subr.bf16.mxu0 0
  %208 = vmatpush1.bf16.msra.mxu0 %v68
  %209 = vmatprep.subr.bf16.mxu0 0
  %210 = vmatpush2.bf16.msra.mxu0 0
  %211 = vmatprep.subr.bf16.mxu0 0
  %212 = vmatpush2.bf16.msra.mxu0 0
  %213 = vmatprep.subr.bf16.mxu0 0
  %214 = vmatpush2.bf16.msra.mxu0 0
  %215 = vmatprep.subr.bf16.mxu0 0
  %216 = vmatpush2.bf16.msra.mxu0 0
  %217 = vmatprep.subr.bf16.mxu0 0
  %218 = vmatpush2.bf16.msra.mxu0 0
  %219 = vmatprep.subr.bf16.mxu0 0
  %220 = vmatpush2.bf16.msra.mxu0 0
  %221 = vmatprep.subr.bf16.mxu0 0
  %222 = vmatpush2.bf16.msra.mxu0 0
  %223 = vmatprep.subr.bf16.mxu0 0
  %224 = vmatpush2.bf16.msra.mxu0 0
  %225 = vmatprep.mubr.bf16.mxu0 0
  %226 = vmatmul.mubr.bf16.gmra.mxu0 %v46
  %v227 = vpop.f32.mrf.mxu0
  %v228 = vadd.f32 %v24, %v227
  %v229 = vpop.f32.mrf.mxu0
  %v230 = vpop.f32.mrf.mxu0
  %v231 = vpop.f32.mrf.mxu0
  %232 = vdwg.mxu0
  %233 = vst [vmem:[%s3] sm:$0xff] %v105
  %234 = vst [vmem:[%s3 + $0x8] sm:$0xff] %v107
  %235 = vst [vmem:[%s3 + $0x10] sm:$0xff] %v146
  %236 = vst [vmem:[%s3 + $0x18] sm:$0xff] %v148
  %237 = vst [vmem:[%s3 + $0x20] sm:$0xff] %v187
  %238 = vst [vmem:[%s3 + $0x28] sm:$0xff] %v189
  %239 = vst [vmem:[%s3 + $0x30] sm:$0xff] %v228
  // Predicated region
  $region14: #{_lambda_.13} parent=0 // pred_check
    _
  $region15: #{_lambda_.13} parent=0 // pred_check_branch
    %241 = sbr.rel (0) target = $region17
  $region16: #{_lambda_.13} parent=0 // pred_region
    _
  $region17: #{_lambda_.13} parent=0 // pred_fallthru
    _
  // Predicated region
  $region18: #{_lambda_.13} parent=0 // pred_check
    _
  $region19: #{_lambda_.13} parent=0 // pred_check_branch
    %243 = sbr.rel (0) target = $region21
  $region20: #{_lambda_.13} parent=0 // pred_region
    _
  $region21: #{_lambda_.13} parent=0 // pred_fallthru
    _

</llo_original>
